<compile_context>
chip_gen: v7x
topology: tpu7x:2x2x1
jax: 0.10.0
libtpu: 0.0.40
codegen_flags: <defaults>
</compile_context>

<pallas_src>
import numpy as np
import jax
import jax.numpy as jnp
from jax import lax
from jax.experimental import pallas as pl
from jax.experimental.pallas import tpu as pltpu


def _shifted_copies(a, row_width):
    """9 copies of flat padded image `a` (C, n); tap (ky,kx) is `a` shifted by
    (ky-1)*row_width + (kx-1) along the flat/lane axis (out-of-range -> 0)."""
    c, n = a.shape
    m = row_width + 1
    z = jnp.zeros((c, m), dtype=a.dtype)
    aext = jnp.concatenate([z, a, z], axis=1)            # (C, n + 2m)
    outs = []
    for ky in range(3):
        for kx in range(3):
            off = m + (ky - 1) * row_width + (kx - 1)    # static int in [0, 2m]
            outs.append(aext[:, off:off + n])
    return outs


def _make_kernel(neg_slope, wp, wop):
    def kernel(x_ref, w1s_ref, w2s_ref, w0s_ref,
               s1_ref, t1_ref, s2_ref, t2_ref, bsum_ref,
               mask_ref, sel2_ref, pool_ref, selq_ref, o_ref):
        x = x_ref[0]                      # (Cin, N)  zero-ring padded, flat
        mask = mask_ref[...]              # (1, N)    1 on interior, 0 on ring

        def act(v):
            return jnp.where(v > 0, v, neg_slope * v)

        # ---- main branch -------------------------------------------------
        # BN1 (eval, folded) + activation; re-zero the padding ring.
        a1 = act(x * s1_ref[...] + t1_ref[...]) * mask

        # conv_1: 3x3 s1 p1, Cin->Cin, single (Cin, 9Cin)@(9Cin, N) matmul.
        x9 = jnp.concatenate(_shifted_copies(a1, wp), axis=0)
        y1 = jnp.dot(w1s_ref[...], x9, preferred_element_type=jnp.float32)

        # BN2 (+conv_1 bias folded) + activation; re-zero ring -> proper
        # zero-padded input for conv_2.
        a2 = act(y1 * s2_ref[...] + t2_ref[...]) * mask

        # conv_2: 3x3 s2 p1, Cin->Cout.  Full stride-1 conv at all padded
        # positions, then stride-2 / interior selection via constant sel2.
        x9b = jnp.concatenate(_shifted_copies(a2, wp), axis=0)
        y2f = jnp.dot(w2s_ref[...], x9b, preferred_element_type=jnp.float32)   # (Cout, N)
        y2 = jnp.dot(y2f, sel2_ref[...], preferred_element_type=jnp.float32)   # (Cout, Ho*Wo)

        # ---- shortcut branch ----------------------------------------------
        # AvgPool2d(3, s2, p1, count_include_pad): 3x3 box-sum everywhere,
        # then `pool` picks the stride-2 windows (x 1/9) and embeds them into
        # a zero-ring padded pooled layout (Cin, Nop).
        shx = _shifted_copies(x, wp)
        box = shx[0]
        for t in range(1, 9):
            box = box + shx[t]
        x1p = jnp.dot(box, pool_ref[...], preferred_element_type=jnp.float32)  # (Cin, Nop)

        # conv_0: 3x3 s1 p1, Cin->Cout on the pooled image; interior selection
        # (selq) maps pooled-padded coords -> output positions.
        x9c = jnp.concatenate(_shifted_copies(x1p, wop), axis=0)
        scf = jnp.dot(w0s_ref[...], x9c, preferred_element_type=jnp.float32)   # (Cout, Nop)
        sc = jnp.dot(scf, selq_ref[...], preferred_element_type=jnp.float32)   # (Cout, Ho*Wo)

        o_ref[0] = y2 + sc + bsum_ref[...]
    return kernel


def residual_block_down_forward(x_nchw, params, *, activate="relu", eps=1e-5):
    """x_nchw: (B, Cin, H, W) float32.  Returns (B, Cout, Ho, Wo)."""
    B, Cin, H, W = x_nchw.shape
    Cout = params["w0"].shape[0]
    Hp, Wp = H + 2, W + 2
    N = Hp * Wp
    Ho, Wo = (H - 1) // 2 + 1, (W - 1) // 2 + 1
    Hop, Wop = Ho + 2, Wo + 2
    Nop = Hop * Wop
    Nout = Ho * Wo
    neg_slope = 0.0 if activate == "relu" else 0.01   # nn.ReLU / nn.LeakyReLU

    # ---- parameter folding / layout (tiny; no big HBM relayouts) ----------
    def stack_taps(w):  # (O, I, 3, 3) -> (O, 9*I), tap-major on K
        o, i = w.shape[0], w.shape[1]
        return jnp.transpose(w, (0, 2, 3, 1)).reshape(o, 9 * i).astype(jnp.float32)

    w1s = stack_taps(params["w1"])
    w2s = stack_taps(params["w2"])
    w0s = stack_taps(params["w0"])

    scale1 = params["g1"] / jnp.sqrt(params["v1"] + eps)
    shift1 = params["be1"] - params["m1"] * scale1
    scale2 = params["g2"] / jnp.sqrt(params["v2"] + eps)
    shift2 = params["be2"] + (params["b1"] - params["m2"]) * scale2
    s1 = scale1.reshape(Cin, 1).astype(jnp.float32)
    t1 = shift1.reshape(Cin, 1).astype(jnp.float32)
    s2 = scale2.reshape(Cin, 1).astype(jnp.float32)
    t2 = shift2.reshape(Cin, 1).astype(jnp.float32)
    bs = (params["b2"] + params["b0"]).reshape(Cout, 1).astype(jnp.float32)

    # ---- constant masks / selection matrices (host-side numpy) ------------
    rr, cc = np.meshgrid(np.arange(Hp), np.arange(Wp), indexing="ij")
    mask = (((rr >= 1) & (rr <= H) & (cc >= 1) & (cc <= W))
            .astype(np.float32).reshape(1, N))
    sel2 = np.zeros((N, Nout), np.float32)   # stride-2 conv output selection
    pool = np.zeros((N, Nop), np.float32)    # avg-pool select + pad-embed (x 1/9)
    selq = np.zeros((Nop, Nout), np.float32) # pooled interior -> output
    for ho in range(Ho):
        for wo in range(Wo):
            m_ = ho * Wo + wo
            p_ = (2 * ho + 1) * Wp + (2 * wo + 1)
            q_ = (ho + 1) * Wop + (wo + 1)
            sel2[p_, m_] = 1.0
            pool[p_, q_] = 1.0 / 9.0
            selq[q_, m_] = 1.0

    # ---- input: NCHW is already (C, H*W) per image; only zero-pad H, W ----
    xpad = jnp.pad(x_nchw.astype(jnp.float32),
                   ((0, 0), (0, 0), (1, 1), (1, 1))).reshape(B, Cin, N)

    kernel = _make_kernel(neg_slope, Wp, Wop)
    full = lambda b: (0, 0)
    out_flat = pl.pallas_call(
        kernel,
        out_shape=jax.ShapeDtypeStruct((B, Cout, Nout), jnp.float32),
        grid_spec=pltpu.PrefetchScalarGridSpec(
            num_scalar_prefetch=0,
            grid=(B,),
            in_specs=[
                pl.BlockSpec((1, Cin, N), lambda b: (b, 0, 0)),
                pl.BlockSpec((Cin, 9 * Cin), full),
                pl.BlockSpec((Cout, 9 * Cin), full),
                pl.BlockSpec((Cout, 9 * Cin), full),
                pl.BlockSpec((Cin, 1), full),
                pl.BlockSpec((Cin, 1), full),
                pl.BlockSpec((Cin, 1), full),
                pl.BlockSpec((Cin, 1), full),
                pl.BlockSpec((Cout, 1), full),
                pl.BlockSpec((1, N), full),
                pl.BlockSpec((N, Nout), full),
                pl.BlockSpec((N, Nop), full),
                pl.BlockSpec((Nop, Nout), full),
            ],
            out_specs=pl.BlockSpec((1, Cout, Nout), lambda b: (b, 0, 0)),
        ),
        compiler_params=pltpu.CompilerParams(
            dimension_semantics=("parallel",)),
    )(xpad, w1s, w2s, w0s, s1, t1, s2, t2, bs,
      jnp.asarray(mask), jnp.asarray(sel2), jnp.asarray(pool), jnp.asarray(selq))

    return out_flat.reshape(B, Cout, Ho, Wo)


def _reference(x, params, *, activate="relu", eps=1e-5):
    """Pure-JAX reference mirroring the PyTorch forward (eval-mode BN)."""
    def bn(v, g, b, m, var):
        return (v - m[None, :, None, None]) * (
            g[None, :, None, None] / jnp.sqrt(var[None, :, None, None] + eps)
        ) + b[None, :, None, None]

    def act(v):
        return jnp.maximum(v, 0.0) if activate == "relu" else jnp.where(v > 0, v, 0.01 * v)

    def conv(v, w, b, stride):
        y = lax.conv_general_dilated(
            v, w, (stride, stride), ((1, 1), (1, 1)),
            dimension_numbers=("NCHW", "OIHW", "NCHW"))
        return y + b[None, :, None, None]

    x1 = lax.reduce_window(x, 0.0, lax.add, (1, 1, 3, 3), (1, 1, 2, 2),
                           ((0, 0), (0, 0), (1, 1), (1, 1))) / 9.0
    shortcut = conv(x1, params["w0"], params["b0"], 1)
    h = act(bn(x, params["g1"], params["be1"], params["m1"], params["v1"]))
    h = conv(h, params["w1"], params["b1"], 1)
    h = act(bn(h, params["g2"], params["be2"], params["m2"], params["v2"]))
    h = conv(h, params["w2"], params["b2"], 2)
    return shortcut + h


if __name__ == "__main__":
    key = jax.random.PRNGKey(0)
    B, Cin, Cout, H, W = 2, 16, 32, 16, 16
    ks = jax.random.split(key, 16)
    params = {
        "g1": 1.0 + 0.1 * jax.random.normal(ks[0], (Cin,), jnp.float32),
        "be1": 0.1 * jax.random.normal(ks[1], (Cin,), jnp.float32),
        "m1": 0.1 * jax.random.normal(ks[2], (Cin,), jnp.float32),
        "v1": jnp.abs(1.0 + 0.1 * jax.random.normal(ks[3], (Cin,), jnp.float32)),
        "g2": 1.0 + 0.1 * jax.random.normal(ks[4], (Cin,), jnp.float32),
        "be2": 0.1 * jax.random.normal(ks[5], (Cin,), jnp.float32),
        "m2": 0.1 * jax.random.normal(ks[6], (Cin,), jnp.float32),
        "v2": jnp.abs(1.0 + 0.1 * jax.random.normal(ks[7], (Cin,), jnp.float32)),
        "w0": 0.1 * jax.random.normal(ks[8], (Cout, Cin, 3, 3), jnp.float32),
        "b0": 0.1 * jax.random.normal(ks[9], (Cout,), jnp.float32),
        "w1": 0.1 * jax.random.normal(ks[10], (Cin, Cin, 3, 3), jnp.float32),
        "b1": 0.1 * jax.random.normal(ks[11], (Cin,), jnp.float32),
        "w2": 0.1 * jax.random.normal(ks[12], (Cout, Cin, 3, 3), jnp.float32),
        "b2": 0.1 * jax.random.normal(ks[13], (Cout,), jnp.float32),
    }
    x = jax.random.normal(ks[14], (B, Cin, H, W), jnp.float32)

    out = jax.block_until_ready(residual_block_down_forward(x, params))
    ref = jax.block_until_ready(_reference(x, params))

    Ho, Wo = (H - 1) // 2 + 1, (W - 1) // 2 + 1
    assert out.shape == (B, Cout, Ho, Wo), out.shape
    max_err = float(jnp.max(jnp.abs(out - ref)))
    assert jnp.allclose(out, ref, atol=1e-4, rtol=1e-4), max_err
    print("KERNEL_OK")
</pallas_src>

<mosaic_0001>
module attributes {stable_mosaic.version = 11 : i64} {
  func.func @kernel(%arg0: i32, %arg1: memref<1x16x324xf32, #tpu.memory_space<vmem>>, %arg2: memref<16x144xf32, #tpu.memory_space<vmem>>, %arg3: memref<32x144xf32, #tpu.memory_space<vmem>>, %arg4: memref<32x144xf32, #tpu.memory_space<vmem>>, %arg5: memref<16x1xf32, #tpu.memory_space<vmem>>, %arg6: memref<16x1xf32, #tpu.memory_space<vmem>>, %arg7: memref<16x1xf32, #tpu.memory_space<vmem>>, %arg8: memref<16x1xf32, #tpu.memory_space<vmem>>, %arg9: memref<32x1xf32, #tpu.memory_space<vmem>>, %arg10: memref<1x324xf32, #tpu.memory_space<vmem>>, %arg11: memref<324x64xf32, #tpu.memory_space<vmem>>, %arg12: memref<324x100xf32, #tpu.memory_space<vmem>>, %arg13: memref<100x64xf32, #tpu.memory_space<vmem>>, %arg14: memref<1x32x64xf32, #tpu.memory_space<vmem>>) attributes {dimension_semantics = [#tpu.dimension_semantics<parallel>], iteration_bounds = array<i64: 2>, scalar_prefetch = 0 : i64, scratch_operands = 0 : i64, tpu.core_type = #tpu.core_type<tc>, window_params = [{transform_indices = @transform_0, window_bounds = array<i64: 1, 16, 324>}, {pipeline_mode = #tpu.pipeline_mode<synchronous>, transform_indices = @transform_1, window_bounds = array<i64: 16, 144>}, {pipeline_mode = #tpu.pipeline_mode<synchronous>, transform_indices = @transform_2, window_bounds = array<i64: 32, 144>}, {pipeline_mode = #tpu.pipeline_mode<synchronous>, transform_indices = @transform_3, window_bounds = array<i64: 32, 144>}, {pipeline_mode = #tpu.pipeline_mode<synchronous>, transform_indices = @transform_4, window_bounds = array<i64: 16, 1>}, {pipeline_mode = #tpu.pipeline_mode<synchronous>, transform_indices = @transform_5, window_bounds = array<i64: 16, 1>}, {pipeline_mode = #tpu.pipeline_mode<synchronous>, transform_indices = @transform_6, window_bounds = array<i64: 16, 1>}, {pipeline_mode = #tpu.pipeline_mode<synchronous>, transform_indices = @transform_7, window_bounds = array<i64: 16, 1>}, {pipeline_mode = #tpu.pipeline_mode<synchronous>, transform_indices = @transform_8, window_bounds = array<i64: 32, 1>}, {pipeline_mode = #tpu.pipeline_mode<synchronous>, transform_indices = @transform_9, window_bounds = array<i64: 1, 324>}, {pipeline_mode = #tpu.pipeline_mode<synchronous>, transform_indices = @transform_10, window_bounds = array<i64: 324, 64>}, {pipeline_mode = #tpu.pipeline_mode<synchronous>, transform_indices = @transform_11, window_bounds = array<i64: 324, 100>}, {pipeline_mode = #tpu.pipeline_mode<synchronous>, transform_indices = @transform_12, window_bounds = array<i64: 100, 64>}, {transform_indices = @transform_13, window_bounds = array<i64: 1, 32, 64>}]} {
    %c0 = arith.constant 0 : index
    %c0_0 = arith.constant 0 : index
    %c0_1 = arith.constant 0 : index
    %0 = vector.load %arg1[%c0, %c0_0, %c0_1] : memref<1x16x324xf32, #tpu.memory_space<vmem>>, vector<1x16x324xf32>
    %1 = vector.shape_cast %0 : vector<1x16x324xf32> to vector<16x324xf32>
    %c0_2 = arith.constant 0 : index
    %c0_3 = arith.constant 0 : index
    %2 = vector.load %arg10[%c0_2, %c0_3] : memref<1x324xf32, #tpu.memory_space<vmem>>, vector<1x324xf32>
    %c0_4 = arith.constant 0 : index
    %c0_5 = arith.constant 0 : index
    %3 = vector.load %arg5[%c0_4, %c0_5] : memref<16x1xf32, #tpu.memory_space<vmem>>, vector<16x1xf32>
    %4 = vector.broadcast %3 : vector<16x1xf32> to vector<16x324xf32>
    %5 = arith.mulf %1, %4 : vector<16x324xf32>
    %c0_6 = arith.constant 0 : index
    %c0_7 = arith.constant 0 : index
    %6 = vector.load %arg6[%c0_6, %c0_7] : memref<16x1xf32, #tpu.memory_space<vmem>>, vector<16x1xf32>
    %7 = vector.broadcast %6 : vector<16x1xf32> to vector<16x324xf32>
    %8 = arith.addf %5, %7 : vector<16x324xf32>
    %cst = arith.constant 0.000000e+00 : f32
    %9 = vector.broadcast %cst : f32 to vector<16x324xf32>
    %10 = arith.cmpf ogt, %8, %9 : vector<16x324xf32>
    %cst_8 = arith.constant 0.000000e+00 : f32
    %11 = vector.broadcast %cst_8 : f32 to vector<16x324xf32>
    %12 = arith.mulf %11, %8 : vector<16x324xf32>
    %13 = arith.select %10, %8, %12 : vector<16x324xi1>, vector<16x324xf32>
    %14 = vector.broadcast %2 : vector<1x324xf32> to vector<16x324xf32>
    %15 = arith.mulf %13, %14 : vector<16x324xf32>
    %cst_9 = arith.constant 0.000000e+00 : f32
    %16 = vector.broadcast %cst_9 : f32 to vector<16x19xf32>
    %17 = tpu.concatenate %16, %15, %16 in 1 : vector<16x19xf32>, vector<16x324xf32>, vector<16x19xf32> -> vector<16x362xf32>
    %18 = vector.extract_strided_slice %17 {offsets = [0, 0], sizes = [16, 324], strides = [1, 1]} : vector<16x362xf32> to vector<16x324xf32>
    %19 = vector.extract_strided_slice %17 {offsets = [0, 1], sizes = [16, 324], strides = [1, 1]} : vector<16x362xf32> to vector<16x324xf32>
    %20 = vector.extract_strided_slice %17 {offsets = [0, 2], sizes = [16, 324], strides = [1, 1]} : vector<16x362xf32> to vector<16x324xf32>
    %21 = vector.extract_strided_slice %17 {offsets = [0, 18], sizes = [16, 324], strides = [1, 1]} : vector<16x362xf32> to vector<16x324xf32>
    %22 = vector.extract_strided_slice %17 {offsets = [0, 19], sizes = [16, 324], strides = [1, 1]} : vector<16x362xf32> to vector<16x324xf32>
    %23 = vector.extract_strided_slice %17 {offsets = [0, 20], sizes = [16, 324], strides = [1, 1]} : vector<16x362xf32> to vector<16x324xf32>
    %24 = vector.extract_strided_slice %17 {offsets = [0, 36], sizes = [16, 324], strides = [1, 1]} : vector<16x362xf32> to vector<16x324xf32>
    %25 = vector.extract_strided_slice %17 {offsets = [0, 37], sizes = [16, 324], strides = [1, 1]} : vector<16x362xf32> to vector<16x324xf32>
    %26 = vector.extract_strided_slice %17 {offsets = [0, 38], sizes = [16, 324], strides = [1, 1]} : vector<16x362xf32> to vector<16x324xf32>
    %27 = tpu.concatenate %18, %19, %20, %21, %22, %23, %24, %25, %26 in 0 : vector<16x324xf32>, vector<16x324xf32>, vector<16x324xf32>, vector<16x324xf32>, vector<16x324xf32>, vector<16x324xf32>, vector<16x324xf32>, vector<16x324xf32>, vector<16x324xf32> -> vector<144x324xf32>
    %c0_10 = arith.constant 0 : index
    %c0_11 = arith.constant 0 : index
    %28 = vector.load %arg2[%c0_10, %c0_11] : memref<16x144xf32, #tpu.memory_space<vmem>>, vector<16x144xf32>
    %cst_12 = arith.constant dense<0.000000e+00> : vector<16x324xf32>
    %29 = tpu.matmul %28, %27, %cst_12 {dimension_numbers = #tpu.dot_dimension_numbers<[1], [0], [0], [1], [0, 0, 1, 1], [], []>} : vector<16x144xf32>, vector<144x324xf32>, vector<16x324xf32> -> vector<16x324xf32>
    %c0_13 = arith.constant 0 : index
    %c0_14 = arith.constant 0 : index
    %30 = vector.load %arg7[%c0_13, %c0_14] : memref<16x1xf32, #tpu.memory_space<vmem>>, vector<16x1xf32>
    %31 = vector.broadcast %30 : vector<16x1xf32> to vector<16x324xf32>
    %32 = arith.mulf %29, %31 : vector<16x324xf32>
    %c0_15 = arith.constant 0 : index
    %c0_16 = arith.constant 0 : index
    %33 = vector.load %arg8[%c0_15, %c0_16] : memref<16x1xf32, #tpu.memory_space<vmem>>, vector<16x1xf32>
    %34 = vector.broadcast %33 : vector<16x1xf32> to vector<16x324xf32>
    %35 = arith.addf %32, %34 : vector<16x324xf32>
    %cst_17 = arith.constant 0.000000e+00 : f32
    %36 = vector.broadcast %cst_17 : f32 to vector<16x324xf32>
    %37 = arith.cmpf ogt, %35, %36 : vector<16x324xf32>
    %cst_18 = arith.constant 0.000000e+00 : f32
    %38 = vector.broadcast %cst_18 : f32 to vector<16x324xf32>
    %39 = arith.mulf %38, %35 : vector<16x324xf32>
    %40 = arith.select %37, %35, %39 : vector<16x324xi1>, vector<16x324xf32>
    %41 = vector.broadcast %2 : vector<1x324xf32> to vector<16x324xf32>
    %42 = arith.mulf %40, %41 : vector<16x324xf32>
    %cst_19 = arith.constant 0.000000e+00 : f32
    %43 = vector.broadcast %cst_19 : f32 to vector<16x19xf32>
    %44 = tpu.concatenate %43, %42, %43 in 1 : vector<16x19xf32>, vector<16x324xf32>, vector<16x19xf32> -> vector<16x362xf32>
    %45 = vector.extract_strided_slice %44 {offsets = [0, 0], sizes = [16, 324], strides = [1, 1]} : vector<16x362xf32> to vector<16x324xf32>
    %46 = vector.extract_strided_slice %44 {offsets = [0, 1], sizes = [16, 324], strides = [1, 1]} : vector<16x362xf32> to vector<16x324xf32>
    %47 = vector.extract_strided_slice %44 {offsets = [0, 2], sizes = [16, 324], strides = [1, 1]} : vector<16x362xf32> to vector<16x324xf32>
    %48 = vector.extract_strided_slice %44 {offsets = [0, 18], sizes = [16, 324], strides = [1, 1]} : vector<16x362xf32> to vector<16x324xf32>
    %49 = vector.extract_strided_slice %44 {offsets = [0, 19], sizes = [16, 324], strides = [1, 1]} : vector<16x362xf32> to vector<16x324xf32>
    %50 = vector.extract_strided_slice %44 {offsets = [0, 20], sizes = [16, 324], strides = [1, 1]} : vector<16x362xf32> to vector<16x324xf32>
    %51 = vector.extract_strided_slice %44 {offsets = [0, 36], sizes = [16, 324], strides = [1, 1]} : vector<16x362xf32> to vector<16x324xf32>
    %52 = vector.extract_strided_slice %44 {offsets = [0, 37], sizes = [16, 324], strides = [1, 1]} : vector<16x362xf32> to vector<16x324xf32>
    %53 = vector.extract_strided_slice %44 {offsets = [0, 38], sizes = [16, 324], strides = [1, 1]} : vector<16x362xf32> to vector<16x324xf32>
    %54 = tpu.concatenate %45, %46, %47, %48, %49, %50, %51, %52, %53 in 0 : vector<16x324xf32>, vector<16x324xf32>, vector<16x324xf32>, vector<16x324xf32>, vector<16x324xf32>, vector<16x324xf32>, vector<16x324xf32>, vector<16x324xf32>, vector<16x324xf32> -> vector<144x324xf32>
    %c0_20 = arith.constant 0 : index
    %c0_21 = arith.constant 0 : index
    %55 = vector.load %arg3[%c0_20, %c0_21] : memref<32x144xf32, #tpu.memory_space<vmem>>, vector<32x144xf32>
    %cst_22 = arith.constant dense<0.000000e+00> : vector<32x324xf32>
    %56 = tpu.matmul %55, %54, %cst_22 {dimension_numbers = #tpu.dot_dimension_numbers<[1], [0], [0], [1], [0, 0, 1, 1], [], []>} : vector<32x144xf32>, vector<144x324xf32>, vector<32x324xf32> -> vector<32x324xf32>
    %c0_23 = arith.constant 0 : index
    %c0_24 = arith.constant 0 : index
    %57 = vector.load %arg11[%c0_23, %c0_24] : memref<324x64xf32, #tpu.memory_space<vmem>>, vector<324x64xf32>
    %cst_25 = arith.constant dense<0.000000e+00> : vector<32x64xf32>
    %58 = tpu.matmul %56, %57, %cst_25 {dimension_numbers = #tpu.dot_dimension_numbers<[1], [0], [0], [1], [0, 0, 1, 1], [], []>} : vector<32x324xf32>, vector<324x64xf32>, vector<32x64xf32> -> vector<32x64xf32>
    %cst_26 = arith.constant 0.000000e+00 : f32
    %59 = vector.broadcast %cst_26 : f32 to vector<16x19xf32>
    %60 = tpu.concatenate %59, %1, %59 in 1 : vector<16x19xf32>, vector<16x324xf32>, vector<16x19xf32> -> vector<16x362xf32>
    %61 = vector.extract_strided_slice %60 {offsets = [0, 0], sizes = [16, 324], strides = [1, 1]} : vector<16x362xf32> to vector<16x324xf32>
    %62 = vector.extract_strided_slice %60 {offsets = [0, 1], sizes = [16, 324], strides = [1, 1]} : vector<16x362xf32> to vector<16x324xf32>
    %63 = vector.extract_strided_slice %60 {offsets = [0, 2], sizes = [16, 324], strides = [1, 1]} : vector<16x362xf32> to vector<16x324xf32>
    %64 = vector.extract_strided_slice %60 {offsets = [0, 18], sizes = [16, 324], strides = [1, 1]} : vector<16x362xf32> to vector<16x324xf32>
    %65 = vector.extract_strided_slice %60 {offsets = [0, 19], sizes = [16, 324], strides = [1, 1]} : vector<16x362xf32> to vector<16x324xf32>
    %66 = vector.extract_strided_slice %60 {offsets = [0, 20], sizes = [16, 324], strides = [1, 1]} : vector<16x362xf32> to vector<16x324xf32>
    %67 = vector.extract_strided_slice %60 {offsets = [0, 36], sizes = [16, 324], strides = [1, 1]} : vector<16x362xf32> to vector<16x324xf32>
    %68 = vector.extract_strided_slice %60 {offsets = [0, 37], sizes = [16, 324], strides = [1, 1]} : vector<16x362xf32> to vector<16x324xf32>
    %69 = vector.extract_strided_slice %60 {offsets = [0, 38], sizes = [16, 324], strides = [1, 1]} : vector<16x362xf32> to vector<16x324xf32>
    %70 = arith.addf %61, %62 : vector<16x324xf32>
    %71 = arith.addf %70, %63 : vector<16x324xf32>
    %72 = arith.addf %71, %64 : vector<16x324xf32>
    %73 = arith.addf %72, %65 : vector<16x324xf32>
    %74 = arith.addf %73, %66 : vector<16x324xf32>
    %75 = arith.addf %74, %67 : vector<16x324xf32>
    %76 = arith.addf %75, %68 : vector<16x324xf32>
    %77 = arith.addf %76, %69 : vector<16x324xf32>
    %c0_27 = arith.constant 0 : index
    %c0_28 = arith.constant 0 : index
    %78 = vector.load %arg12[%c0_27, %c0_28] : memref<324x100xf32, #tpu.memory_space<vmem>>, vector<324x100xf32>
    %cst_29 = arith.constant dense<0.000000e+00> : vector<16x100xf32>
    %79 = tpu.matmul %77, %78, %cst_29 {dimension_numbers = #tpu.dot_dimension_numbers<[1], [0], [0], [1], [0, 0, 1, 1], [], []>} : vector<16x324xf32>, vector<324x100xf32>, vector<16x100xf32> -> vector<16x100xf32>
    %cst_30 = arith.constant 0.000000e+00 : f32
    %80 = vector.broadcast %cst_30 : f32 to vector<16x11xf32>
    %81 = tpu.concatenate %80, %79, %80 in 1 : vector<16x11xf32>, vector<16x100xf32>, vector<16x11xf32> -> vector<16x122xf32>
    %82 = vector.extract_strided_slice %81 {offsets = [0, 0], sizes = [16, 100], strides = [1, 1]} : vector<16x122xf32> to vector<16x100xf32>
    %83 = vector.extract_strided_slice %81 {offsets = [0, 1], sizes = [16, 100], strides = [1, 1]} : vector<16x122xf32> to vector<16x100xf32>
    %84 = vector.extract_strided_slice %81 {offsets = [0, 2], sizes = [16, 100], strides = [1, 1]} : vector<16x122xf32> to vector<16x100xf32>
    %85 = vector.extract_strided_slice %81 {offsets = [0, 10], sizes = [16, 100], strides = [1, 1]} : vector<16x122xf32> to vector<16x100xf32>
    %86 = vector.extract_strided_slice %81 {offsets = [0, 11], sizes = [16, 100], strides = [1, 1]} : vector<16x122xf32> to vector<16x100xf32>
    %87 = vector.extract_strided_slice %81 {offsets = [0, 12], sizes = [16, 100], strides = [1, 1]} : vector<16x122xf32> to vector<16x100xf32>
    %88 = vector.extract_strided_slice %81 {offsets = [0, 20], sizes = [16, 100], strides = [1, 1]} : vector<16x122xf32> to vector<16x100xf32>
    %89 = vector.extract_strided_slice %81 {offsets = [0, 21], sizes = [16, 100], strides = [1, 1]} : vector<16x122xf32> to vector<16x100xf32>
    %90 = vector.extract_strided_slice %81 {offsets = [0, 22], sizes = [16, 100], strides = [1, 1]} : vector<16x122xf32> to vector<16x100xf32>
    %91 = tpu.concatenate %82, %83, %84, %85, %86, %87, %88, %89, %90 in 0 : vector<16x100xf32>, vector<16x100xf32>, vector<16x100xf32>, vector<16x100xf32>, vector<16x100xf32>, vector<16x100xf32>, vector<16x100xf32>, vector<16x100xf32>, vector<16x100xf32> -> vector<144x100xf32>
    %c0_31 = arith.constant 0 : index
    %c0_32 = arith.constant 0 : index
    %92 = vector.load %arg4[%c0_31, %c0_32] : memref<32x144xf32, #tpu.memory_space<vmem>>, vector<32x144xf32>
    %cst_33 = arith.constant dense<0.000000e+00> : vector<32x100xf32>
    %93 = tpu.matmul %92, %91, %cst_33 {dimension_numbers = #tpu.dot_dimension_numbers<[1], [0], [0], [1], [0, 0, 1, 1], [], []>} : vector<32x144xf32>, vector<144x100xf32>, vector<32x100xf32> -> vector<32x100xf32>
    %c0_34 = arith.constant 0 : index
    %c0_35 = arith.constant 0 : index
    %94 = vector.load %arg13[%c0_34, %c0_35] : memref<100x64xf32, #tpu.memory_space<vmem>>, vector<100x64xf32>
    %cst_36 = arith.constant dense<0.000000e+00> : vector<32x64xf32>
    %95 = tpu.matmul %93, %94, %cst_36 {dimension_numbers = #tpu.dot_dimension_numbers<[1], [0], [0], [1], [0, 0, 1, 1], [], []>} : vector<32x100xf32>, vector<100x64xf32>, vector<32x64xf32> -> vector<32x64xf32>
    %96 = arith.addf %58, %95 : vector<32x64xf32>
    %c0_37 = arith.constant 0 : index
    %c0_38 = arith.constant 0 : index
    %97 = vector.load %arg9[%c0_37, %c0_38] : memref<32x1xf32, #tpu.memory_space<vmem>>, vector<32x1xf32>
    %98 = vector.broadcast %97 : vector<32x1xf32> to vector<32x64xf32>
    %99 = arith.addf %96, %98 : vector<32x64xf32>
    %c0_39 = arith.constant 0 : index
    %c0_40 = arith.constant 0 : index
    %c0_41 = arith.constant 0 : index
    %100 = vector.load %arg14[%c0_39, %c0_40, %c0_41] : memref<1x32x64xf32, #tpu.memory_space<vmem>>, vector<1x32x64xf32>
    %101 = vector.shape_cast %100 : vector<1x32x64xf32> to vector<32x64xf32>
    %102 = vector.shape_cast %99 : vector<32x64xf32> to vector<1x32x64xf32>
    tpu.vector_store %arg14[%c0_39, %c0_40, %c0_41], %102 {strides = array<i32>} : memref<1x32x64xf32, #tpu.memory_space<vmem>>, vector<1x32x64xf32>,
    return
  }
  func.func @transform_0(%arg0: i32) -> (i32, i32, i32) {
    %c0_i32 = arith.constant 0 : i32
    %c0_i32_0 = arith.constant 0 : i32
    %c0_i32_1 = arith.constant 0 : i32
    return %arg0, %c0_i32, %c0_i32_0 : i32, i32, i32
  }
  func.func @transform_1(%arg0: i32) -> (i32, i32) {
    %c0_i32 = arith.constant 0 : i32
    %c0_i32_0 = arith.constant 0 : i32
    %c0_i32_1 = arith.constant 0 : i32
    return %c0_i32, %c0_i32_0 : i32, i32
  }
  func.func @transform_2(%arg0: i32) -> (i32, i32) {
    %c0_i32 = arith.constant 0 : i32
    %c0_i32_0 = arith.constant 0 : i32
    %c0_i32_1 = arith.constant 0 : i32
    return %c0_i32, %c0_i32_0 : i32, i32
  }
  func.func @transform_3(%arg0: i32) -> (i32, i32) {
    %c0_i32 = arith.constant 0 : i32
    %c0_i32_0 = arith.constant 0 : i32
    %c0_i32_1 = arith.constant 0 : i32
    return %c0_i32, %c0_i32_0 : i32, i32
  }
  func.func @transform_4(%arg0: i32) -> (i32, i32) {
    %c0_i32 = arith.constant 0 : i32
    %c0_i32_0 = arith.constant 0 : i32
    %c0_i32_1 = arith.constant 0 : i32
    return %c0_i32, %c0_i32_0 : i32, i32
  }
  func.func @transform_5(%arg0: i32) -> (i32, i32) {
    %c0_i32 = arith.constant 0 : i32
    %c0_i32_0 = arith.constant 0 : i32
    %c0_i32_1 = arith.constant 0 : i32
    return %c0_i32, %c0_i32_0 : i32, i32
  }
  func.func @transform_6(%arg0: i32) -> (i32, i32) {
    %c0_i32 = arith.constant 0 : i32
    %c0_i32_0 = arith.constant 0 : i32
    %c0_i32_1 = arith.constant 0 : i32
    return %c0_i32, %c0_i32_0 : i32, i32
  }
  func.func @transform_7(%arg0: i32) -> (i32, i32) {
    %c0_i32 = arith.constant 0 : i32
    %c0_i32_0 = arith.constant 0 : i32
    %c0_i32_1 = arith.constant 0 : i32
    return %c0_i32, %c0_i32_0 : i32, i32
  }
  func.func @transform_8(%arg0: i32) -> (i32, i32) {
    %c0_i32 = arith.constant 0 : i32
    %c0_i32_0 = arith.constant 0 : i32
    %c0_i32_1 = arith.constant 0 : i32
    return %c0_i32, %c0_i32_0 : i32, i32
  }
  func.func @transform_9(%arg0: i32) -> (i32, i32) {
    %c0_i32 = arith.constant 0 : i32
    %c0_i32_0 = arith.constant 0 : i32
    %c0_i32_1 = arith.constant 0 : i32
    return %c0_i32, %c0_i32_0 : i32, i32
  }
  func.func @transform_10(%arg0: i32) -> (i32, i32) {
    %c0_i32 = arith.constant 0 : i32
    %c0_i32_0 = arith.constant 0 : i32
    %c0_i32_1 = arith.constant 0 : i32
    return %c0_i32, %c0_i32_0 : i32, i32
  }
  func.func @transform_11(%arg0: i32) -> (i32, i32) {
    %c0_i32 = arith.constant 0 : i32
    %c0_i32_0 = arith.constant 0 : i32
    %c0_i32_1 = arith.constant 0 : i32
    return %c0_i32, %c0_i32_0 : i32, i32
  }
  func.func @transform_12(%arg0: i32) -> (i32, i32) {
    %c0_i32 = arith.constant 0 : i32
    %c0_i32_0 = arith.constant 0 : i32
    %c0_i32_1 = arith.constant 0 : i32
    return %c0_i32, %c0_i32_0 : i32, i32
  }
  func.func @transform_13(%arg0: i32) -> (i32, i32, i32) {
    %c0_i32 = arith.constant 0 : i32
    %c0_i32_0 = arith.constant 0 : i32
    %c0_i32_1 = arith.constant 0 : i32
    return %arg0, %c0_i32, %c0_i32_0 : i32, i32, i32
  }
}

</mosaic_0001>

<llo_original>
// kernel: tpu_custom_call.1
$region0: #{tpu_custom_call.1}
  #allocation0 [shape = 'u32[]', space=smem, size = 0x4, offset = 0x4, fixed_abs, tag = 'smem constant byte address 0x4 - core index']
  #allocation1 [shape = 'u32[144,128]{1,0:T(1,128)}', space=vmem, size = 0x12000, scoped, tag = 'internal scratch']
  %s0 = inlined_call_operand.vmem [shape: f32[2,16,324], index: 0, kind: input, shape index: {}]
  %s1 = inlined_call_operand.vmem [shape: f32[16,144], index: 1, kind: input, shape index: {}]
  %s2 = inlined_call_operand.vmem [shape: f32[32,144], index: 2, kind: input, shape index: {}]
  %s3 = inlined_call_operand.vmem [shape: f32[32,144], index: 3, kind: input, shape index: {}]
  %s4 = inlined_call_operand.vmem [shape: f32[16,1], index: 4, kind: input, shape index: {}]
  %s5 = inlined_call_operand.vmem [shape: f32[16,1], index: 5, kind: input, shape index: {}]
  %s6 = inlined_call_operand.vmem [shape: f32[16,1], index: 6, kind: input, shape index: {}]
  %s7 = inlined_call_operand.vmem [shape: f32[16,1], index: 7, kind: input, shape index: {}]
  %s8 = inlined_call_operand.vmem [shape: f32[32,1], index: 8, kind: input, shape index: {}]
  %s9 = inlined_call_operand.vmem [shape: f32[1,324], index: 9, kind: input, shape index: {}]
  %s10 = inlined_call_operand.vmem [shape: f32[324,64], index: 10, kind: input, shape index: {}]
  %s11 = inlined_call_operand.vmem [shape: f32[324,100], index: 11, kind: input, shape index: {}]
  %s12 = inlined_call_operand.vmem [shape: f32[100,64], index: 12, kind: input, shape index: {}]
  %s13 = inlined_call_operand.hbm [shape: f32[2,32,64], index: 13, kind: output, shape index: {}]
  %s14 = sld [smem:[#allocation0]]
  $region85: #{tpu_custom_call.1} parent=0
    _
  %s16 = ssub.s32 1, %s14
  %s17 = scalar_select 0, %s16, %s14
  $region1: #{tpu_custom_call.1} parent=0
    #allocation2 [shape = 'u8[32768]{0}', space=vmem, size = 0x8000, scoped, tag = 'output window, operand 0']
    #allocation3 [shape = 's32[2]{0}', space=sflag, size = 0x8, scoped, tag = 'scoped memory for tpu_custom_call.1']
    %18 = vsyncpa [#allocation3], 0
    %s19 = scalar_lea.sflag [#allocation3], 1
    %20 = vsyncpa %s19, 0
    loop: start=0, step=1, limit=4
    $region2: #{tpu_custom_call.1} parent=1 // loop_pre_header
      _
    $region3: #{tpu_custom_call.1} parent=1 // loop_header
      %s22 = sphi 0, %s26
      %p23 = scmp.ge.s32.totalorder %s22, 4
      %s32 = sphi 0, %s34
      %s35 = sphi 0, %s32
      %s36 = sphi 0, %s35
      %s52 = sphi 0, %s36
      %s56 = sphi 0, %s56
      %s58 = sphi 0, %s56
      %s59 = sphi 0, %s58
      %s73 = sphi 0, %s59
      %s77 = sphi 0, %s77
      %s79 = sphi 0, %s77
      %s80 = sphi 0, %s79
      %s94 = sphi 0, %s80
      %s98 = sphi 0, %s98
      %s100 = sphi 0, %s98
      %s101 = sphi 0, %s100
      %s115 = sphi 0, %s101
      %s119 = sphi 0, %s119
      %s121 = sphi 0, %s119
      %s122 = sphi 0, %s121
      %s136 = sphi 0, %s122
      %s140 = sphi 0, %s140
      %s142 = sphi 0, %s140
      %s143 = sphi 0, %s142
      %s157 = sphi 0, %s143
      %s161 = sphi 0, %s161
      %s163 = sphi 0, %s161
      %s164 = sphi 0, %s163
      %s178 = sphi 0, %s164
      %s182 = sphi 0, %s182
      %s184 = sphi 0, %s182
      %s185 = sphi 0, %s184
      %s199 = sphi 0, %s185
      %s203 = sphi 0, %s203
      %s205 = sphi 0, %s203
      %s206 = sphi 0, %s205
      %s220 = sphi 0, %s206
      %s224 = sphi 0, %s224
      %s226 = sphi 0, %s224
      %s227 = sphi 0, %s226
      %s241 = sphi 0, %s227
      %s245 = sphi 0, %s245
      %s247 = sphi 0, %s245
      %s248 = sphi 0, %s247
      %s262 = sphi 0, %s248
      %s266 = sphi 0, %s266
      %s268 = sphi 0, %s266
      %s269 = sphi 0, %s268
      %s283 = sphi 0, %s269
      %s287 = sphi 0, %s287
      %s289 = sphi 0, %s287
      %s290 = sphi 0, %s289
      %s304 = sphi 0, %s290
      %s310 = sphi 0, %s312
      %s313 = sphi 0, %s310
      %s314 = sphi 0, %s313
      %s330 = sphi 0, %s314
    $region4: #{tpu_custom_call.1} parent=1 // loop_header_branch
      %25 = sbr.rel (%p23) target = $region8
    $region5: #{tpu_custom_call.1} parent=1 // loop_body
      %s27 = ssub.s32 %s22, 1
      %s28 = ssub.s32 %s22, 2
      %s29 = sadd.s32 %s22, 1
      %s30 = ssub.s32 %s22, %s29
      %p31 = scmp.eq.s32.totalorder %s30, 0
      %s33 = sadd.s32 %s32, 1
      %s34 = scalar_select %p31, %s32, %s33
      %p37 = pneg %p31
      %p38 = scmp.eq.s32.totalorder %s22, 1
      %p39 = por %p37, %p38
      %p40 = scmp.ne.s32.totalorder %s32, %s35
      %p41 = scmp.eq.s32.totalorder %s22, 0
      %p42 = por %p40, %p41
      %p43 = scmp.ne.s32.totalorder %s32, %s35
      %p44 = scmp.eq.s32.totalorder %s27, 1
      %p45 = por %p43, %p44
      %p46 = scmp.ne.s32.totalorder %s35, %s36
      %p47 = scmp.eq.s32.totalorder %s27, 0
      %p48 = por %p46, %p47
      %p49 = scmp.ne.s32.totalorder %s35, %s36
      %p50 = scmp.eq.s32.totalorder %s28, 1
      %p51 = por %p49, %p50
      %p53 = scmp.ne.s32.totalorder %s36, %s52
      %p54 = scmp.eq.s32.totalorder %s28, 0
      %p55 = por %p53, %p54
      %s57 = sadd.s32 %s56, 1
      %p60 = scmp.eq.s32.totalorder %s22, 1
      %p61 = scmp.ne.s32.totalorder %s56, %s58
      %p62 = scmp.eq.s32.totalorder %s22, 0
      %p63 = por %p61, %p62
      %p64 = scmp.ne.s32.totalorder %s56, %s58
      %p65 = scmp.eq.s32.totalorder %s27, 1
      %p66 = por %p64, %p65
      %p67 = scmp.ne.s32.totalorder %s58, %s59
      %p68 = scmp.eq.s32.totalorder %s27, 0
      %p69 = por %p67, %p68
      %p70 = scmp.ne.s32.totalorder %s58, %s59
      %p71 = scmp.eq.s32.totalorder %s28, 1
      %p72 = por %p70, %p71
      %p74 = scmp.ne.s32.totalorder %s59, %s73
      %p75 = scmp.eq.s32.totalorder %s28, 0
      %p76 = por %p74, %p75
      %s78 = sadd.s32 %s77, 1
      %p81 = scmp.eq.s32.totalorder %s22, 1
      %p82 = scmp.ne.s32.totalorder %s77, %s79
      %p83 = scmp.eq.s32.totalorder %s22, 0
      %p84 = por %p82, %p83
      %p85 = scmp.ne.s32.totalorder %s77, %s79
      %p86 = scmp.eq.s32.totalorder %s27, 1
      %p87 = por %p85, %p86
      %p88 = scmp.ne.s32.totalorder %s79, %s80
      %p89 = scmp.eq.s32.totalorder %s27, 0
      %p90 = por %p88, %p89
      %p91 = scmp.ne.s32.totalorder %s79, %s80
      %p92 = scmp.eq.s32.totalorder %s28, 1
      %p93 = por %p91, %p92
      %p95 = scmp.ne.s32.totalorder %s80, %s94
      %p96 = scmp.eq.s32.totalorder %s28, 0
      %p97 = por %p95, %p96
      %s99 = sadd.s32 %s98, 1
      %p102 = scmp.eq.s32.totalorder %s22, 1
      %p103 = scmp.ne.s32.totalorder %s98, %s100
      %p104 = scmp.eq.s32.totalorder %s22, 0
      %p105 = por %p103, %p104
      %p106 = scmp.ne.s32.totalorder %s98, %s100
      %p107 = scmp.eq.s32.totalorder %s27, 1
      %p108 = por %p106, %p107
      %p109 = scmp.ne.s32.totalorder %s100, %s101
      %p110 = scmp.eq.s32.totalorder %s27, 0
      %p111 = por %p109, %p110
      %p112 = scmp.ne.s32.totalorder %s100, %s101
      %p113 = scmp.eq.s32.totalorder %s28, 1
      %p114 = por %p112, %p113
      %p116 = scmp.ne.s32.totalorder %s101, %s115
      %p117 = scmp.eq.s32.totalorder %s28, 0
      %p118 = por %p116, %p117
      %s120 = sadd.s32 %s119, 1
      %p123 = scmp.eq.s32.totalorder %s22, 1
      %p124 = scmp.ne.s32.totalorder %s119, %s121
      %p125 = scmp.eq.s32.totalorder %s22, 0
      %p126 = por %p124, %p125
      %p127 = scmp.ne.s32.totalorder %s119, %s121
      %p128 = scmp.eq.s32.totalorder %s27, 1
      %p129 = por %p127, %p128
      %p130 = scmp.ne.s32.totalorder %s121, %s122
      %p131 = scmp.eq.s32.totalorder %s27, 0
      %p132 = por %p130, %p131
      %p133 = scmp.ne.s32.totalorder %s121, %s122
      %p134 = scmp.eq.s32.totalorder %s28, 1
      %p135 = por %p133, %p134
      %p137 = scmp.ne.s32.totalorder %s122, %s136
      %p138 = scmp.eq.s32.totalorder %s28, 0
      %p139 = por %p137, %p138
      %s141 = sadd.s32 %s140, 1
      %p144 = scmp.eq.s32.totalorder %s22, 1
      %p145 = scmp.ne.s32.totalorder %s140, %s142
      %p146 = scmp.eq.s32.totalorder %s22, 0
      %p147 = por %p145, %p146
      %p148 = scmp.ne.s32.totalorder %s140, %s142
      %p149 = scmp.eq.s32.totalorder %s27, 1
      %p150 = por %p148, %p149
      %p151 = scmp.ne.s32.totalorder %s142, %s143
      %p152 = scmp.eq.s32.totalorder %s27, 0
      %p153 = por %p151, %p152
      %p154 = scmp.ne.s32.totalorder %s142, %s143
      %p155 = scmp.eq.s32.totalorder %s28, 1
      %p156 = por %p154, %p155
      %p158 = scmp.ne.s32.totalorder %s143, %s157
      %p159 = scmp.eq.s32.totalorder %s28, 0
      %p160 = por %p158, %p159
      %s162 = sadd.s32 %s161, 1
      %p165 = scmp.eq.s32.totalorder %s22, 1
      %p166 = scmp.ne.s32.totalorder %s161, %s163
      %p167 = scmp.eq.s32.totalorder %s22, 0
      %p168 = por %p166, %p167
      %p169 = scmp.ne.s32.totalorder %s161, %s163
      %p170 = scmp.eq.s32.totalorder %s27, 1
      %p171 = por %p169, %p170
      %p172 = scmp.ne.s32.totalorder %s163, %s164
      %p173 = scmp.eq.s32.totalorder %s27, 0
      %p174 = por %p172, %p173
      %p175 = scmp.ne.s32.totalorder %s163, %s164
      %p176 = scmp.eq.s32.totalorder %s28, 1
      %p177 = por %p175, %p176
      %p179 = scmp.ne.s32.totalorder %s164, %s178
      %p180 = scmp.eq.s32.totalorder %s28, 0
      %p181 = por %p179, %p180
      %s183 = sadd.s32 %s182, 1
      %p186 = scmp.eq.s32.totalorder %s22, 1
      %p187 = scmp.ne.s32.totalorder %s182, %s184
      %p188 = scmp.eq.s32.totalorder %s22, 0
      %p189 = por %p187, %p188
      %p190 = scmp.ne.s32.totalorder %s182, %s184
      %p191 = scmp.eq.s32.totalorder %s27, 1
      %p192 = por %p190, %p191
      %p193 = scmp.ne.s32.totalorder %s184, %s185
      %p194 = scmp.eq.s32.totalorder %s27, 0
      %p195 = por %p193, %p194
      %p196 = scmp.ne.s32.totalorder %s184, %s185
      %p197 = scmp.eq.s32.totalorder %s28, 1
      %p198 = por %p196, %p197
      %p200 = scmp.ne.s32.totalorder %s185, %s199
      %p201 = scmp.eq.s32.totalorder %s28, 0
      %p202 = por %p200, %p201
      %s204 = sadd.s32 %s203, 1
      %p207 = scmp.eq.s32.totalorder %s22, 1
      %p208 = scmp.ne.s32.totalorder %s203, %s205
      %p209 = scmp.eq.s32.totalorder %s22, 0
      %p210 = por %p208, %p209
      %p211 = scmp.ne.s32.totalorder %s203, %s205
      %p212 = scmp.eq.s32.totalorder %s27, 1
      %p213 = por %p211, %p212
      %p214 = scmp.ne.s32.totalorder %s205, %s206
      %p215 = scmp.eq.s32.totalorder %s27, 0
      %p216 = por %p214, %p215
      %p217 = scmp.ne.s32.totalorder %s205, %s206
      %p218 = scmp.eq.s32.totalorder %s28, 1
      %p219 = por %p217, %p218
      %p221 = scmp.ne.s32.totalorder %s206, %s220
      %p222 = scmp.eq.s32.totalorder %s28, 0
      %p223 = por %p221, %p222
      %s225 = sadd.s32 %s224, 1
      %p228 = scmp.eq.s32.totalorder %s22, 1
      %p229 = scmp.ne.s32.totalorder %s224, %s226
      %p230 = scmp.eq.s32.totalorder %s22, 0
      %p231 = por %p229, %p230
      %p232 = scmp.ne.s32.totalorder %s224, %s226
      %p233 = scmp.eq.s32.totalorder %s27, 1
      %p234 = por %p232, %p233
      %p235 = scmp.ne.s32.totalorder %s226, %s227
      %p236 = scmp.eq.s32.totalorder %s27, 0
      %p237 = por %p235, %p236
      %p238 = scmp.ne.s32.totalorder %s226, %s227
      %p239 = scmp.eq.s32.totalorder %s28, 1
      %p240 = por %p238, %p239
      %p242 = scmp.ne.s32.totalorder %s227, %s241
      %p243 = scmp.eq.s32.totalorder %s28, 0
      %p244 = por %p242, %p243
      %s246 = sadd.s32 %s245, 1
      %p249 = scmp.eq.s32.totalorder %s22, 1
      %p250 = scmp.ne.s32.totalorder %s245, %s247
      %p251 = scmp.eq.s32.totalorder %s22, 0
      %p252 = por %p250, %p251
      %p253 = scmp.ne.s32.totalorder %s245, %s247
      %p254 = scmp.eq.s32.totalorder %s27, 1
      %p255 = por %p253, %p254
      %p256 = scmp.ne.s32.totalorder %s247, %s248
      %p257 = scmp.eq.s32.totalorder %s27, 0
      %p258 = por %p256, %p257
      %p259 = scmp.ne.s32.totalorder %s247, %s248
      %p260 = scmp.eq.s32.totalorder %s28, 1
      %p261 = por %p259, %p260
      %p263 = scmp.ne.s32.totalorder %s248, %s262
      %p264 = scmp.eq.s32.totalorder %s28, 0
      %p265 = por %p263, %p264
      %s267 = sadd.s32 %s266, 1
      %p270 = scmp.eq.s32.totalorder %s22, 1
      %p271 = scmp.ne.s32.totalorder %s266, %s268
      %p272 = scmp.eq.s32.totalorder %s22, 0
      %p273 = por %p271, %p272
      %p274 = scmp.ne.s32.totalorder %s266, %s268
      %p275 = scmp.eq.s32.totalorder %s27, 1
      %p276 = por %p274, %p275
      %p277 = scmp.ne.s32.totalorder %s268, %s269
      %p278 = scmp.eq.s32.totalorder %s27, 0
      %p279 = por %p277, %p278
      %p280 = scmp.ne.s32.totalorder %s268, %s269
      %p281 = scmp.eq.s32.totalorder %s28, 1
      %p282 = por %p280, %p281
      %p284 = scmp.ne.s32.totalorder %s269, %s283
      %p285 = scmp.eq.s32.totalorder %s28, 0
      %p286 = por %p284, %p285
      %s288 = sadd.s32 %s287, 1
      %p291 = scmp.eq.s32.totalorder %s22, 1
      %p292 = scmp.ne.s32.totalorder %s287, %s289
      %p293 = scmp.eq.s32.totalorder %s22, 0
      %p294 = por %p292, %p293
      %p295 = scmp.ne.s32.totalorder %s287, %s289
      %p296 = scmp.eq.s32.totalorder %s27, 1
      %p297 = por %p295, %p296
      %p298 = scmp.ne.s32.totalorder %s289, %s290
      %p299 = scmp.eq.s32.totalorder %s27, 0
      %p300 = por %p298, %p299
      %p301 = scmp.ne.s32.totalorder %s289, %s290
      %p302 = scmp.eq.s32.totalorder %s28, 1
      %p303 = por %p301, %p302
      %p305 = scmp.ne.s32.totalorder %s290, %s304
      %p306 = scmp.eq.s32.totalorder %s28, 0
      %p307 = por %p305, %p306
      %s308 = ssub.s32 %s22, %s29
      %p309 = scmp.eq.s32.totalorder %s308, 0
      %s311 = sadd.s32 %s310, 1
      %s312 = scalar_select %p309, %s310, %s311
      %p315 = pneg %p309
      %p316 = scmp.eq.s32.totalorder %s22, 1
      %p317 = por %p315, %p316
      %p318 = scmp.ne.s32.totalorder %s310, %s313
      %p319 = scmp.eq.s32.totalorder %s22, 0
      %p320 = por %p318, %p319
      %p321 = scmp.ne.s32.totalorder %s310, %s313
      %p322 = scmp.eq.s32.totalorder %s27, 1
      %p323 = por %p321, %p322
      %p324 = scmp.ne.s32.totalorder %s313, %s314
      %p325 = scmp.eq.s32.totalorder %s27, 0
      %p326 = por %p324, %p325
      %p327 = scmp.ne.s32.totalorder %s313, %s314
      %p328 = scmp.eq.s32.totalorder %s28, 1
      %p329 = por %p327, %p328
      %p331 = scmp.ne.s32.totalorder %s314, %s330
      %p332 = scmp.eq.s32.totalorder %s28, 0
      %p333 = por %p331, %p332
      %p334 = scmp.le.s32.totalorder 1, %s22
      %p335 = scmp.lt.s32.totalorder %s22, 3
      %p336 = pnand %p334, %p335
      %p337 = pneg %p336
      // Predicated region
      $region9: #{tpu_custom_call.1} parent=5 // pred_check
        _
      $region10: #{tpu_custom_call.1} parent=5 // pred_check_branch
        %339 = sbr.rel (%p336) target = $region12
      $region11: #{tpu_custom_call.1} parent=5 // pred_region
        %s340 = ssub.s32 %s22, 1
        // Predicated region
        $region13: #{tpu_custom_call.1} parent=11 // pred_check
          %p341 = pneg %p69
        $region14: #{tpu_custom_call.1} parent=11 // pred_check_branch
          %343 = sbr.rel (%p341) target = $region16
        $region15: #{tpu_custom_call.1} parent=11 // pred_region
          _
        $region16: #{tpu_custom_call.1} parent=11 // pred_fallthru
          _
        // Predicated region
        $region17: #{tpu_custom_call.1} parent=11 // pred_check
          %p344 = pneg %p90
        $region18: #{tpu_custom_call.1} parent=11 // pred_check_branch
          %346 = sbr.rel (%p344) target = $region20
        $region19: #{tpu_custom_call.1} parent=11 // pred_region
          _
        $region20: #{tpu_custom_call.1} parent=11 // pred_fallthru
          _
        // Predicated region
        $region21: #{tpu_custom_call.1} parent=11 // pred_check
          %p347 = pneg %p111
        $region22: #{tpu_custom_call.1} parent=11 // pred_check_branch
          %349 = sbr.rel (%p347) target = $region24
        $region23: #{tpu_custom_call.1} parent=11 // pred_region
          _
        $region24: #{tpu_custom_call.1} parent=11 // pred_fallthru
          _
        // Predicated region
        $region25: #{tpu_custom_call.1} parent=11 // pred_check
          %p350 = pneg %p132
        $region26: #{tpu_custom_call.1} parent=11 // pred_check_branch
          %352 = sbr.rel (%p350) target = $region28
        $region27: #{tpu_custom_call.1} parent=11 // pred_region
          _
        $region28: #{tpu_custom_call.1} parent=11 // pred_fallthru
          _
        // Predicated region
        $region29: #{tpu_custom_call.1} parent=11 // pred_check
          %p353 = pneg %p153
        $region30: #{tpu_custom_call.1} parent=11 // pred_check_branch
          %355 = sbr.rel (%p353) target = $region32
        $region31: #{tpu_custom_call.1} parent=11 // pred_region
          _
        $region32: #{tpu_custom_call.1} parent=11 // pred_fallthru
          _
        // Predicated region
        $region33: #{tpu_custom_call.1} parent=11 // pred_check
          %p356 = pneg %p174
        $region34: #{tpu_custom_call.1} parent=11 // pred_check_branch
          %358 = sbr.rel (%p356) target = $region36
        $region35: #{tpu_custom_call.1} parent=11 // pred_region
          _
        $region36: #{tpu_custom_call.1} parent=11 // pred_fallthru
          _
        // Predicated region
        $region37: #{tpu_custom_call.1} parent=11 // pred_check
          %p359 = pneg %p195
        $region38: #{tpu_custom_call.1} parent=11 // pred_check_branch
          %361 = sbr.rel (%p359) target = $region40
        $region39: #{tpu_custom_call.1} parent=11 // pred_region
          _
        $region40: #{tpu_custom_call.1} parent=11 // pred_fallthru
          _
        // Predicated region
        $region41: #{tpu_custom_call.1} parent=11 // pred_check
          %p362 = pneg %p216
        $region42: #{tpu_custom_call.1} parent=11 // pred_check_branch
          %364 = sbr.rel (%p362) target = $region44
        $region43: #{tpu_custom_call.1} parent=11 // pred_region
          _
        $region44: #{tpu_custom_call.1} parent=11 // pred_fallthru
          _
        // Predicated region
        $region45: #{tpu_custom_call.1} parent=11 // pred_check
          %p365 = pneg %p237
        $region46: #{tpu_custom_call.1} parent=11 // pred_check_branch
          %367 = sbr.rel (%p365) target = $region48
        $region47: #{tpu_custom_call.1} parent=11 // pred_region
          _
        $region48: #{tpu_custom_call.1} parent=11 // pred_fallthru
          _
        // Predicated region
        $region49: #{tpu_custom_call.1} parent=11 // pred_check
          %p368 = pneg %p258
        $region50: #{tpu_custom_call.1} parent=11 // pred_check_branch
          %370 = sbr.rel (%p368) target = $region52
        $region51: #{tpu_custom_call.1} parent=11 // pred_region
          _
        $region52: #{tpu_custom_call.1} parent=11 // pred_fallthru
          _
        // Predicated region
        $region53: #{tpu_custom_call.1} parent=11 // pred_check
          %p371 = pneg %p279
        $region54: #{tpu_custom_call.1} parent=11 // pred_check_branch
          %373 = sbr.rel (%p371) target = $region56
        $region55: #{tpu_custom_call.1} parent=11 // pred_region
          _
        $region56: #{tpu_custom_call.1} parent=11 // pred_fallthru
          _
        // Predicated region
        $region57: #{tpu_custom_call.1} parent=11 // pred_check
          %p374 = pneg %p300
        $region58: #{tpu_custom_call.1} parent=11 // pred_check_branch
          %376 = sbr.rel (%p374) target = $region60
        $region59: #{tpu_custom_call.1} parent=11 // pred_region
          _
        $region60: #{tpu_custom_call.1} parent=11 // pred_fallthru
          _
      $region12: #{tpu_custom_call.1} parent=5 // pred_fallthru
        _
      %p377 = scmp.lt.s32.totalorder %s22, 2
      // Predicated region
      $region61: #{tpu_custom_call.1} parent=5 // pred_check
        %p378 = pneg %p377
      $region62: #{tpu_custom_call.1} parent=5 // pred_check_branch
        %380 = sbr.rel (%p378) target = $region64
      $region63: #{tpu_custom_call.1} parent=5 // pred_region
        // Predicated region
        $region65: #{tpu_custom_call.1} parent=63 // pred_check
          %p381 = pneg %p42
        $region66: #{tpu_custom_call.1} parent=63 // pred_check_branch
          %383 = sbr.rel (%p381) target = $region68
        $region67: #{tpu_custom_call.1} parent=63 // pred_region
          %p384 = scmp.lt.s32.totalorder %s22, 1
          %s385 = scalar_select %p384, %s22, 1
          %s386 = smul.addr %s385, 6
          %s387 = smul.addr %s386, 8
          %s388 = scalar_lea.vmem %s0, %s387
        $region68: #{tpu_custom_call.1} parent=63 // pred_fallthru
          _
      $region64: #{tpu_custom_call.1} parent=5 // pred_fallthru
        _
      %p389 = scmp.le.s32.totalorder 1, %s22
      %p390 = scmp.lt.s32.totalorder %s22, 3
      %p391 = pnand %p389, %p390
      %p392 = pneg %p391
      // Predicated region
      $region69: #{tpu_custom_call.1} parent=5 // pred_check
        _
      $region70: #{tpu_custom_call.1} parent=5 // pred_check_branch
        %394 = sbr.rel (%p391) target = $region72
      $region71: #{tpu_custom_call.1} parent=5 // pred_region
        %s395 = ssub.s32 %s22, 1
        %p396 = scmp.lt.s32.totalorder %s27, 1
        %s397 = scalar_select %p396, %s27, 1
        %s398 = smul.addr %s397, 6
        %s399 = smul.addr %s398, 8
        %s400 = scalar_lea.vmem %s0, %s399
        %p401 = pneg %p48
        %p402 = pneg %p45
        %p403 = pneg %p69
        %p404 = pneg %p66
        %p405 = pneg %p90
        %p406 = pneg %p87
        %p407 = pneg %p111
        %p408 = pneg %p108
        %p409 = pneg %p132
        %p410 = pneg %p129
        %p411 = pneg %p153
        %p412 = pneg %p150
        %p413 = pneg %p174
        %p414 = pneg %p171
        %p415 = pneg %p195
        %p416 = pneg %p192
        %p417 = pneg %p216
        %p418 = pneg %p213
        %p419 = pneg %p237
        %p420 = pneg %p234
        %p421 = pneg %p258
        %p422 = pneg %p255
        %p423 = pneg %p279
        %p424 = pneg %p276
        %p425 = pneg %p300
        %p426 = pneg %p297
        %p427 = pneg %p326
        %p428 = pneg %p323
        %s429 = sand.u32 %s313, 1
        %s430 = scalar_lea.sflag [#allocation3], %s429
        %s431 = sand.u32 %s313, 1
        %s432 = smul.addr %s431, 32
        %s433 = scalar_lea.vmem [#allocation2], %s432
        %p434 = scmp.lt.s32.totalorder %s27, 1
        %s435 = scalar_select %p434, %s27, 1
        %s436 = smul.addr %s435, 6
        %s437 = smul.addr %s436, 8
        %s438 = scalar_lea.vmem %s0, %s437
        %v439 = vld [vmem:[%s438] sm:$0xff]
        %v440 = vld [vmem:[%s438 + $0x8] sm:$0xff]
        %v441 = vld [vmem:[%s438 + $0x10] sm:$0xff]
        %v442 = vld [vmem:[%s438 + $0x18] sm:$0xff]
        %v443 = vld [vmem:[%s438 + $0x20] sm:$0xff]
        %v444 = vld [vmem:[%s438 + $0x28] sm:$0xff]
        %v445 = vld [vmem:[%s9] sm:$0x7]
        %v446 = vld [vmem:[%s4] sm:$0xff]
        %v447 = vld [vmem:[%s4 + $0x8] sm:$0xff]
        %449 = vset.pattern.permute.xlu0 0
        %450 = vperm.xlu0 %449, %v446
        %v451 = vpop.permute.xlu0 %450
        %454 = vset.pattern.permute.xlu0 0
        %455 = vperm.xlu0 %454, %v447
        %v456 = vpop.permute.xlu0 %455
        %v458 = vmul.f32 %v439, %v451
        %v459 = vmul.f32 %v440, %v451
        %v460 = vmul.f32 %v441, %v451
        %v461 = vmul.f32 %v442, %v456
        %v462 = vmul.f32 %v443, %v456
        %v463 = vmul.f32 %v444, %v456
        %v464 = vld [vmem:[%s5] sm:$0xff]
        %v465 = vld [vmem:[%s5 + $0x8] sm:$0xff]
        %467 = vset.pattern.permute.xlu0 0
        %468 = vperm.xlu0 %467, %v464
        %v469 = vpop.permute.xlu0 %468
        %472 = vset.pattern.permute.xlu0 0
        %473 = vperm.xlu0 %472, %v465
        %v474 = vpop.permute.xlu0 %473
        %v476 = vadd.f32 %v458, %v469
        %v477 = vadd.f32 %v459, %v469
        %v478 = vadd.f32 %v460, %v469
        %v479 = vadd.f32 %v461, %v474
        %v480 = vadd.f32 %v462, %v474
        %v481 = vadd.f32 %v463, %v474
        %vm482 = vcmp.gt.f32.partialorder %v476, 0.0
        %vm483 = vcmp.gt.f32.partialorder %v477, 0.0
        %vm484 = vcmp.gt.f32.partialorder %v478, 0.0
        %vm485 = vcmp.gt.f32.partialorder %v479, 0.0
        %vm486 = vcmp.gt.f32.partialorder %v480, 0.0
        %vm487 = vcmp.gt.f32.partialorder %v481, 0.0
        %v488 = vmul.f32 %v476, 0.0
        %v489 = vmul.f32 %v477, 0.0
        %v490 = vmul.f32 %v478, 0.0
        %v491 = vmul.f32 %v479, 0.0
        %v492 = vmul.f32 %v480, 0.0
        %v493 = vmul.f32 %v481, 0.0
        %v494 = vsel %vm482, %v476, %v488
        %v495 = vsel %vm483, %v477, %v489
        %v496 = vsel %vm484, %v478, %v490
        %v497 = vsel %vm485, %v479, %v491
        %v498 = vsel %vm486, %v480, %v492
        %v499 = vsel %vm487, %v481, %v493
        %v501 = vlaneseq
        %v502 = vshrl.u32 %v501, 7
        %v503 = vsub.s32 0, %v502
        %v504 = vrot.slane %v445, %v503
        %v505 = vlaneseq
        %v506 = vshrl.u32 %v505, 7
        %v507 = vsub.s32 1, %v506
        %v508 = vrot.slane %v445, %v507
        %v509 = vlaneseq
        %v510 = vshrl.u32 %v509, 7
        %v511 = vsub.s32 2, %v510
        %v512 = vrot.slane %v445, %v511
        %v516 = vmul.f32 %v494, %v504
        %v517 = vmul.f32 %v495, %v508
        %v518 = vmul.f32 %v496, %v512
        %v519 = vmul.f32 %v497, %v504
        %v520 = vmul.f32 %v498, %v508
        %v521 = vmul.f32 %v499, %v512
        %528 = vrot.lane.b32.xlu0 %v516, 19
        %v529 = vpop.permute.xlu0 %528
        %530 = vrot.lane.b32.xlu0 %v517, 19
        %v531 = vpop.permute.xlu0 %530
        %532 = vrot.lane.b32.xlu0 %v518, 19
        %v533 = vpop.permute.xlu0 %532
        %534 = vrot.lane.b32.xlu0 %v519, 19
        %v535 = vpop.permute.xlu0 %534
        %536 = vrot.lane.b32.xlu0 %v520, 19
        %v537 = vpop.permute.xlu0 %536
        %538 = vrot.lane.b32.xlu0 %v521, 19
        %v539 = vpop.permute.xlu0 %538
        %vm540 = vcmask 154624
        %v541 = vsel %vm540, %v529, %v531
        %v542 = vsel %vm540, %v531, %v533
        %v543 = vsel %vm540, %v535, %v537
        %v544 = vsel %vm540, %v537, %v539
        %v551 = vsel %vm540, 0.0, %v529
        %v552 = vsel %vm540, 0.0, %v535
        %vm553 = vcmask 711680
        %v554 = vsel %vm553, %v542, 0.0
        %v555 = vsel %vm553, %v544, 0.0
        %560 = vrot.lane.b32.xlu0 %v551, 127
        %v561 = vpop.permute.xlu0 %560
        %562 = vrot.lane.b32.xlu0 %v541, 127
        %v563 = vpop.permute.xlu0 %562
        %564 = vrot.lane.b32.xlu0 %v554, 127
        %v565 = vpop.permute.xlu0 %564
        %566 = vrot.lane.b32.xlu0 %v552, 127
        %v567 = vpop.permute.xlu0 %566
        %568 = vrot.lane.b32.xlu0 %v543, 127
        %v569 = vpop.permute.xlu0 %568
        %570 = vrot.lane.b32.xlu0 %v555, 127
        %v571 = vpop.permute.xlu0 %570
        %vm572 = vcmask 1039360
        %v573 = vsel %vm572, %v561, %v563
        %v574 = vsel %vm572, %v563, %v565
        %v575 = vsel %vm572, %v567, %v569
        %v576 = vsel %vm572, %v569, %v571
        %583 = vrot.lane.b32.xlu0 %v551, 126
        %v584 = vpop.permute.xlu0 %583
        %585 = vrot.lane.b32.xlu0 %v541, 126
        %v586 = vpop.permute.xlu0 %585
        %587 = vrot.lane.b32.xlu0 %v554, 126
        %v588 = vpop.permute.xlu0 %587
        %589 = vrot.lane.b32.xlu0 %v552, 126
        %v590 = vpop.permute.xlu0 %589
        %591 = vrot.lane.b32.xlu0 %v543, 126
        %v592 = vpop.permute.xlu0 %591
        %593 = vrot.lane.b32.xlu0 %v555, 126
        %v594 = vpop.permute.xlu0 %593
        %vm595 = vcmask 1031168
        %v596 = vsel %vm595, %v584, %v586
        %v597 = vsel %vm595, %v586, %v588
        %v598 = vsel %vm595, %v590, %v592
        %v599 = vsel %vm595, %v592, %v594
        %606 = vrot.lane.b32.xlu0 %v551, 110
        %v607 = vpop.permute.xlu0 %606
        %608 = vrot.lane.b32.xlu0 %v541, 110
        %v609 = vpop.permute.xlu0 %608
        %610 = vrot.lane.b32.xlu0 %v554, 110
        %v611 = vpop.permute.xlu0 %610
        %612 = vrot.lane.b32.xlu0 %v552, 110
        %v613 = vpop.permute.xlu0 %612
        %614 = vrot.lane.b32.xlu0 %v543, 110
        %v615 = vpop.permute.xlu0 %614
        %616 = vrot.lane.b32.xlu0 %v555, 110
        %v617 = vpop.permute.xlu0 %616
        %vm618 = vcmask 900096
        %v619 = vsel %vm618, %v607, %v609
        %v620 = vsel %vm618, %v609, %v611
        %v621 = vsel %vm618, %v613, %v615
        %v622 = vsel %vm618, %v615, %v617
        %629 = vrot.lane.b32.xlu0 %v551, 109
        %v630 = vpop.permute.xlu0 %629
        %631 = vrot.lane.b32.xlu0 %v541, 109
        %v632 = vpop.permute.xlu0 %631
        %633 = vrot.lane.b32.xlu0 %v554, 109
        %v634 = vpop.permute.xlu0 %633
        %635 = vrot.lane.b32.xlu0 %v552, 109
        %v636 = vpop.permute.xlu0 %635
        %637 = vrot.lane.b32.xlu0 %v543, 109
        %v638 = vpop.permute.xlu0 %637
        %639 = vrot.lane.b32.xlu0 %v555, 109
        %v640 = vpop.permute.xlu0 %639
        %vm641 = vcmask 891904
        %v642 = vsel %vm641, %v630, %v632
        %v643 = vsel %vm641, %v632, %v634
        %v644 = vsel %vm641, %v636, %v638
        %v645 = vsel %vm641, %v638, %v640
        %652 = vrot.lane.b32.xlu0 %v551, 108
        %v653 = vpop.permute.xlu0 %652
        %654 = vrot.lane.b32.xlu0 %v541, 108
        %v655 = vpop.permute.xlu0 %654
        %656 = vrot.lane.b32.xlu0 %v554, 108
        %v657 = vpop.permute.xlu0 %656
        %658 = vrot.lane.b32.xlu0 %v552, 108
        %v659 = vpop.permute.xlu0 %658
        %660 = vrot.lane.b32.xlu0 %v543, 108
        %v661 = vpop.permute.xlu0 %660
        %662 = vrot.lane.b32.xlu0 %v555, 108
        %v663 = vpop.permute.xlu0 %662
        %vm664 = vcmask 883712
        %v665 = vsel %vm664, %v653, %v655
        %v666 = vsel %vm664, %v655, %v657
        %v667 = vsel %vm664, %v659, %v661
        %v668 = vsel %vm664, %v661, %v663
        %675 = vrot.lane.b32.xlu0 %v551, 92
        %v676 = vpop.permute.xlu0 %675
        %677 = vrot.lane.b32.xlu0 %v541, 92
        %v678 = vpop.permute.xlu0 %677
        %679 = vrot.lane.b32.xlu0 %v554, 92
        %v680 = vpop.permute.xlu0 %679
        %681 = vrot.lane.b32.xlu0 %v552, 92
        %v682 = vpop.permute.xlu0 %681
        %683 = vrot.lane.b32.xlu0 %v543, 92
        %v684 = vpop.permute.xlu0 %683
        %685 = vrot.lane.b32.xlu0 %v555, 92
        %v686 = vpop.permute.xlu0 %685
        %vm687 = vcmask 752640
        %v688 = vsel %vm687, %v676, %v678
        %v689 = vsel %vm687, %v678, %v680
        %v690 = vsel %vm687, %v682, %v684
        %v691 = vsel %vm687, %v684, %v686
        %698 = vrot.lane.b32.xlu0 %v551, 91
        %v699 = vpop.permute.xlu0 %698
        %700 = vrot.lane.b32.xlu0 %v541, 91
        %v701 = vpop.permute.xlu0 %700
        %702 = vrot.lane.b32.xlu0 %v554, 91
        %v703 = vpop.permute.xlu0 %702
        %704 = vrot.lane.b32.xlu0 %v552, 91
        %v705 = vpop.permute.xlu0 %704
        %706 = vrot.lane.b32.xlu0 %v543, 91
        %v707 = vpop.permute.xlu0 %706
        %708 = vrot.lane.b32.xlu0 %v555, 91
        %v709 = vpop.permute.xlu0 %708
        %vm710 = vcmask 744448
        %v711 = vsel %vm710, %v699, %v701
        %v712 = vsel %vm710, %v701, %v703
        %v713 = vsel %vm710, %v705, %v707
        %v714 = vsel %vm710, %v707, %v709
        %721 = vrot.lane.b32.xlu0 %v551, 90
        %v722 = vpop.permute.xlu0 %721
        %723 = vrot.lane.b32.xlu0 %v541, 90
        %v724 = vpop.permute.xlu0 %723
        %725 = vrot.lane.b32.xlu0 %v554, 90
        %v726 = vpop.permute.xlu0 %725
        %727 = vrot.lane.b32.xlu0 %v552, 90
        %v728 = vpop.permute.xlu0 %727
        %729 = vrot.lane.b32.xlu0 %v543, 90
        %v730 = vpop.permute.xlu0 %729
        %731 = vrot.lane.b32.xlu0 %v555, 90
        %v732 = vpop.permute.xlu0 %731
        %vm733 = vcmask 736256
        %v734 = vsel %vm733, %v722, %v724
        %v735 = vsel %vm733, %v724, %v726
        %v736 = vsel %vm733, %v728, %v730
        %v737 = vsel %vm733, %v730, %v732
        %v744 = vld [vmem:[%s1] sm:$0xff]
        %v745 = vld [vmem:[%s1 + $0x8] sm:$0xff]
        %v746 = vld [vmem:[%s1 + $0x10] sm:$0xff]
        %v747 = vld [vmem:[%s1 + $0x18] sm:$0xff]
        %vm748 = vcmask 130048
        %v750 = vsel %vm748, %v745, 0
        %v753 = vsel %vm748, %v747, 0
        %755 = vmatprep.subr.mxu0 %v541
        %756 = vmatpush1.msra.mxu0 %v551
        %757 = vmatprep.subr.mxu0 %v543
        %758 = vmatpush1.msra.mxu0 %v552
        %759 = vmatprep.subr.mxu0 %v574
        %760 = vmatpush1.msra.mxu0 %v573
        %761 = vmatprep.subr.mxu0 %v576
        %762 = vmatpush1.msra.mxu0 %v575
        %763 = vmatprep.subr.mxu0 %v597
        %764 = vmatpush1.msra.mxu0 %v596
        %765 = vmatprep.subr.mxu0 %v599
        %766 = vmatpush1.msra.mxu0 %v598
        %767 = vmatprep.subr.mxu0 %v620
        %768 = vmatpush1.msra.mxu0 %v619
        %769 = vmatprep.subr.mxu0 %v622
        %770 = vmatpush1.msra.mxu0 %v621
        %771 = vmatprep.subr.mxu0 %v643
        %772 = vmatpush1.msra.mxu0 %v642
        %773 = vmatprep.subr.mxu0 %v645
        %774 = vmatpush1.msra.mxu0 %v644
        %775 = vmatprep.subr.mxu0 %v666
        %776 = vmatpush1.msra.mxu0 %v665
        %777 = vmatprep.subr.mxu0 %v668
        %778 = vmatpush1.msra.mxu0 %v667
        %779 = vmatprep.subr.mxu0 %v689
        %780 = vmatpush1.msra.mxu0 %v688
        %781 = vmatprep.subr.mxu0 %v691
        %782 = vmatpush1.msra.mxu0 %v690
        %783 = vmatprep.subr.mxu0 %v712
        %784 = vmatpush1.msra.mxu0 %v711
        %785 = vmatprep.subr.mxu0 %v714
        %786 = vmatpush1.msra.mxu0 %v713
        %787 = vmatprep.subr.mxu0 %v735
        %788 = vmatpush1.msra.mxu0 %v734
        %789 = vmatprep.subr.mxu0 %v737
        %790 = vmatpush1.msra.mxu0 %v736
        %791 = vmatprep.subr.mxu0 0.0
        %792 = vmatpush1.msra.mxu0 0.0
        %793 = vmatprep.subr.mxu0 0.0
        %794 = vmatpush1.msra.mxu0 0.0
        %795 = vmatprep.subr.mxu0 0.0
        %796 = vmatpush1.msra.mxu0 0.0
        %797 = vmatprep.subr.mxu0 0.0
        %798 = vmatpush1.msra.mxu0 0.0
        %799 = vmatprep.subr.mxu0 0.0
        %800 = vmatpush1.msra.mxu0 0.0
        %801 = vmatprep.subr.mxu0 0.0
        %802 = vmatpush1.msra.mxu0 0.0
        %803 = vmatprep.subr.mxu0 0.0
        %804 = vmatpush1.msra.mxu0 0.0
        %805 = vmatprep.subr.mxu0 0.0
        %806 = vmatpush1.msra.mxu0 0.0
        %807 = vmatprep.subr.mxu0 0.0
        %808 = vmatpush1.msra.mxu0 0.0
        %809 = vmatprep.subr.mxu0 0.0
        %810 = vmatpush1.msra.mxu0 0.0
        %811 = vmatprep.subr.mxu0 0.0
        %812 = vmatpush1.msra.mxu0 0.0
        %813 = vmatprep.subr.mxu0 0.0
        %814 = vmatpush1.msra.mxu0 0.0
        %815 = vmatprep.subr.mxu0 0.0
        %816 = vmatpush1.msra.mxu0 0.0
        %817 = vmatprep.subr.mxu0 0.0
        %818 = vmatpush1.msra.mxu0 0.0
        %819 = vmatprep.mubr.f32.mxu0 %v750
        %820 = vmatmul.mubr.f32.gmra.mrb[0].mxu0 %v744
        %v821 = vpop.f32.mrb[0].mxu0
        %v822 = vadd.f32 0.0, %v821
        %v823 = vpop.f32.mrb[0].mxu0
        %v824 = vadd.f32 0.0, %v823
        %825 = vmatprep.mubr.f32.mxu0 %v753
        %826 = vmatmul.mubr.f32.gmra.mrb[0].mxu0 %v746
        %v827 = vpop.f32.mrb[0].mxu0
        %v828 = vadd.f32 0.0, %v827
        %v829 = vpop.f32.mrb[0].mxu0
        %v830 = vadd.f32 0.0, %v829
        %831 = vdwg.mxu0
        %832 = vmatprep.subr.mxu0 0.0
        %833 = vmatpush1.msra.mxu0 %v554
        %834 = vmatprep.subr.mxu0 0.0
        %835 = vmatpush1.msra.mxu0 %v555
        %836 = vmatprep.subr.mxu0 0.0
        %837 = vmatpush1.msra.mxu0 %v565
        %838 = vmatprep.subr.mxu0 0.0
        %839 = vmatpush1.msra.mxu0 %v571
        %840 = vmatprep.subr.mxu0 0.0
        %841 = vmatpush1.msra.mxu0 %v588
        %842 = vmatprep.subr.mxu0 0.0
        %843 = vmatpush1.msra.mxu0 %v594
        %844 = vmatprep.subr.mxu0 0.0
        %845 = vmatpush1.msra.mxu0 %v611
        %846 = vmatprep.subr.mxu0 0.0
        %847 = vmatpush1.msra.mxu0 %v617
        %848 = vmatprep.subr.mxu0 0.0
        %849 = vmatpush1.msra.mxu0 %v634
        %850 = vmatprep.subr.mxu0 0.0
        %851 = vmatpush1.msra.mxu0 %v640
        %852 = vmatprep.subr.mxu0 0.0
        %853 = vmatpush1.msra.mxu0 %v657
        %854 = vmatprep.subr.mxu0 0.0
        %855 = vmatpush1.msra.mxu0 %v663
        %856 = vmatprep.subr.mxu0 0.0
        %857 = vmatpush1.msra.mxu0 %v680
        %858 = vmatprep.subr.mxu0 0.0
        %859 = vmatpush1.msra.mxu0 %v686
        %860 = vmatprep.subr.mxu0 0.0
        %861 = vmatpush1.msra.mxu0 %v703
        %862 = vmatprep.subr.mxu0 0.0
        %863 = vmatpush1.msra.mxu0 %v709
        %864 = vmatprep.subr.mxu0 0.0
        %865 = vmatpush1.msra.mxu0 %v726
        %866 = vmatprep.subr.mxu0 0.0
        %867 = vmatpush1.msra.mxu0 %v732
        %868 = vmatprep.subr.mxu0 0.0
        %869 = vmatpush1.msra.mxu0 0.0
        %870 = vmatprep.subr.mxu0 0.0
        %871 = vmatpush1.msra.mxu0 0.0
        %872 = vmatprep.subr.mxu0 0.0
        %873 = vmatpush1.msra.mxu0 0.0
        %874 = vmatprep.subr.mxu0 0.0
        %875 = vmatpush1.msra.mxu0 0.0
        %876 = vmatprep.subr.mxu0 0.0
        %877 = vmatpush1.msra.mxu0 0.0
        %878 = vmatprep.subr.mxu0 0.0
        %879 = vmatpush1.msra.mxu0 0.0
        %880 = vmatprep.subr.mxu0 0.0
        %881 = vmatpush1.msra.mxu0 0.0
        %882 = vmatprep.subr.mxu0 0.0
        %883 = vmatpush1.msra.mxu0 0.0
        %884 = vmatprep.subr.mxu0 0.0
        %885 = vmatpush1.msra.mxu0 0.0
        %886 = vmatprep.subr.mxu0 0.0
        %887 = vmatpush1.msra.mxu0 0.0
        %888 = vmatprep.subr.mxu0 0.0
        %889 = vmatpush1.msra.mxu0 0.0
        %890 = vmatprep.subr.mxu0 0.0
        %891 = vmatpush1.msra.mxu0 0.0
        %892 = vmatprep.subr.mxu0 0.0
        %893 = vmatpush1.msra.mxu0 0.0
        %894 = vmatprep.subr.mxu0 0.0
        %895 = vmatpush1.msra.mxu0 0.0
        %896 = vmatprep.mubr.f32.mxu0 %v750
        %897 = vmatmul.mubr.f32.gmra.mrb[0].mxu0 %v744
        %v898 = vpop.f32.mrb[0].mxu0
        %v899 = vadd.f32 0.0, %v898
        %v900 = vpop.f32.mrb[0].mxu0
        %901 = vmatprep.mubr.f32.mxu0 %v753
        %902 = vmatmul.mubr.f32.gmra.mrb[0].mxu0 %v746
        %v903 = vpop.f32.mrb[0].mxu0
        %v904 = vadd.f32 0.0, %v903
        %v905 = vpop.f32.mrb[0].mxu0
        %906 = vdwg.mxu0
        %v907 = vld [vmem:[%s6] sm:$0xff]
        %v908 = vld [vmem:[%s6 + $0x8] sm:$0xff]
        %910 = vset.pattern.permute.xlu0 0
        %911 = vperm.xlu0 %910, %v907
        %v912 = vpop.permute.xlu0 %911
        %915 = vset.pattern.permute.xlu0 0
        %916 = vperm.xlu0 %915, %v908
        %v917 = vpop.permute.xlu0 %916
        %v919 = vmul.f32 %v822, %v912
        %v920 = vmul.f32 %v824, %v912
        %v921 = vmul.f32 %v899, %v912
        %v922 = vmul.f32 %v828, %v917
        %v923 = vmul.f32 %v830, %v917
        %v924 = vmul.f32 %v904, %v917
        %v925 = vld [vmem:[%s7] sm:$0xff]
        %v926 = vld [vmem:[%s7 + $0x8] sm:$0xff]
        %928 = vset.pattern.permute.xlu0 0
        %929 = vperm.xlu0 %928, %v925
        %v930 = vpop.permute.xlu0 %929
        %933 = vset.pattern.permute.xlu0 0
        %934 = vperm.xlu0 %933, %v926
        %v935 = vpop.permute.xlu0 %934
        %v937 = vadd.f32 %v919, %v930
        %v938 = vadd.f32 %v920, %v930
        %v939 = vadd.f32 %v921, %v930
        %v940 = vadd.f32 %v922, %v935
        %v941 = vadd.f32 %v923, %v935
        %v942 = vadd.f32 %v924, %v935
        %vm943 = vcmp.gt.f32.partialorder %v937, 0.0
        %vm944 = vcmp.gt.f32.partialorder %v938, 0.0
        %vm945 = vcmp.gt.f32.partialorder %v939, 0.0
        %vm946 = vcmp.gt.f32.partialorder %v940, 0.0
        %vm947 = vcmp.gt.f32.partialorder %v941, 0.0
        %vm948 = vcmp.gt.f32.partialorder %v942, 0.0
        %v949 = vmul.f32 %v937, 0.0
        %v950 = vmul.f32 %v938, 0.0
        %v951 = vmul.f32 %v939, 0.0
        %v952 = vmul.f32 %v940, 0.0
        %v953 = vmul.f32 %v941, 0.0
        %v954 = vmul.f32 %v942, 0.0
        %v955 = vsel %vm943, %v937, %v949
        %v956 = vsel %vm944, %v938, %v950
        %v957 = vsel %vm945, %v939, %v951
        %v958 = vsel %vm946, %v940, %v952
        %v959 = vsel %vm947, %v941, %v953
        %v960 = vsel %vm948, %v942, %v954
        %v961 = vmul.f32 %v955, %v504
        %v962 = vmul.f32 %v956, %v508
        %v963 = vmul.f32 %v957, %v512
        %v964 = vmul.f32 %v958, %v504
        %v965 = vmul.f32 %v959, %v508
        %v966 = vmul.f32 %v960, %v512
        %973 = vrot.lane.b32.xlu0 %v961, 19
        %v974 = vpop.permute.xlu0 %973
        %975 = vrot.lane.b32.xlu0 %v962, 19
        %v976 = vpop.permute.xlu0 %975
        %977 = vrot.lane.b32.xlu0 %v963, 19
        %v978 = vpop.permute.xlu0 %977
        %979 = vrot.lane.b32.xlu0 %v964, 19
        %v980 = vpop.permute.xlu0 %979
        %981 = vrot.lane.b32.xlu0 %v965, 19
        %v982 = vpop.permute.xlu0 %981
        %983 = vrot.lane.b32.xlu0 %v966, 19
        %v984 = vpop.permute.xlu0 %983
        %v985 = vsel %vm540, %v974, %v976
        %v986 = vsel %vm540, %v976, %v978
        %v987 = vsel %vm540, %v980, %v982
        %v988 = vsel %vm540, %v982, %v984
        %v995 = vsel %vm540, 0.0, %v974
        %v996 = vsel %vm540, 0.0, %v980
        %v997 = vsel %vm553, %v986, 0.0
        %v998 = vsel %vm553, %v988, 0.0
        %1003 = vrot.lane.b32.xlu0 %v995, 127
        %v1004 = vpop.permute.xlu0 %1003
        %1005 = vrot.lane.b32.xlu0 %v985, 127
        %v1006 = vpop.permute.xlu0 %1005
        %1007 = vrot.lane.b32.xlu0 %v997, 127
        %v1008 = vpop.permute.xlu0 %1007
        %1009 = vrot.lane.b32.xlu0 %v996, 127
        %v1010 = vpop.permute.xlu0 %1009
        %1011 = vrot.lane.b32.xlu0 %v987, 127
        %v1012 = vpop.permute.xlu0 %1011
        %1013 = vrot.lane.b32.xlu0 %v998, 127
        %v1014 = vpop.permute.xlu0 %1013
        %v1015 = vsel %vm572, %v1004, %v1006
        %v1016 = vsel %vm572, %v1006, %v1008
        %v1017 = vsel %vm572, %v1010, %v1012
        %v1018 = vsel %vm572, %v1012, %v1014
        %1025 = vrot.lane.b32.xlu0 %v995, 126
        %v1026 = vpop.permute.xlu0 %1025
        %1027 = vrot.lane.b32.xlu0 %v985, 126
        %v1028 = vpop.permute.xlu0 %1027
        %1029 = vrot.lane.b32.xlu0 %v997, 126
        %v1030 = vpop.permute.xlu0 %1029
        %1031 = vrot.lane.b32.xlu0 %v996, 126
        %v1032 = vpop.permute.xlu0 %1031
        %1033 = vrot.lane.b32.xlu0 %v987, 126
        %v1034 = vpop.permute.xlu0 %1033
        %1035 = vrot.lane.b32.xlu0 %v998, 126
        %v1036 = vpop.permute.xlu0 %1035
        %v1037 = vsel %vm595, %v1026, %v1028
        %v1038 = vsel %vm595, %v1028, %v1030
        %v1039 = vsel %vm595, %v1032, %v1034
        %v1040 = vsel %vm595, %v1034, %v1036
        %1047 = vrot.lane.b32.xlu0 %v995, 110
        %v1048 = vpop.permute.xlu0 %1047
        %1049 = vrot.lane.b32.xlu0 %v985, 110
        %v1050 = vpop.permute.xlu0 %1049
        %1051 = vrot.lane.b32.xlu0 %v997, 110
        %v1052 = vpop.permute.xlu0 %1051
        %1053 = vrot.lane.b32.xlu0 %v996, 110
        %v1054 = vpop.permute.xlu0 %1053
        %1055 = vrot.lane.b32.xlu0 %v987, 110
        %v1056 = vpop.permute.xlu0 %1055
        %1057 = vrot.lane.b32.xlu0 %v998, 110
        %v1058 = vpop.permute.xlu0 %1057
        %v1059 = vsel %vm618, %v1048, %v1050
        %v1060 = vsel %vm618, %v1050, %v1052
        %v1061 = vsel %vm618, %v1054, %v1056
        %v1062 = vsel %vm618, %v1056, %v1058
        %1069 = vrot.lane.b32.xlu0 %v995, 109
        %v1070 = vpop.permute.xlu0 %1069
        %1071 = vrot.lane.b32.xlu0 %v985, 109
        %v1072 = vpop.permute.xlu0 %1071
        %1073 = vrot.lane.b32.xlu0 %v997, 109
        %v1074 = vpop.permute.xlu0 %1073
        %1075 = vrot.lane.b32.xlu0 %v996, 109
        %v1076 = vpop.permute.xlu0 %1075
        %1077 = vrot.lane.b32.xlu0 %v987, 109
        %v1078 = vpop.permute.xlu0 %1077
        %1079 = vrot.lane.b32.xlu0 %v998, 109
        %v1080 = vpop.permute.xlu0 %1079
        %v1081 = vsel %vm641, %v1070, %v1072
        %v1082 = vsel %vm641, %v1072, %v1074
        %v1083 = vsel %vm641, %v1076, %v1078
        %v1084 = vsel %vm641, %v1078, %v1080
        %1091 = vrot.lane.b32.xlu0 %v995, 108
        %v1092 = vpop.permute.xlu0 %1091
        %1093 = vrot.lane.b32.xlu0 %v985, 108
        %v1094 = vpop.permute.xlu0 %1093
        %1095 = vrot.lane.b32.xlu0 %v997, 108
        %v1096 = vpop.permute.xlu0 %1095
        %1097 = vrot.lane.b32.xlu0 %v996, 108
        %v1098 = vpop.permute.xlu0 %1097
        %1099 = vrot.lane.b32.xlu0 %v987, 108
        %v1100 = vpop.permute.xlu0 %1099
        %1101 = vrot.lane.b32.xlu0 %v998, 108
        %v1102 = vpop.permute.xlu0 %1101
        %v1103 = vsel %vm664, %v1092, %v1094
        %v1104 = vsel %vm664, %v1094, %v1096
        %v1105 = vsel %vm664, %v1098, %v1100
        %v1106 = vsel %vm664, %v1100, %v1102
        %1113 = vrot.lane.b32.xlu0 %v995, 92
        %v1114 = vpop.permute.xlu0 %1113
        %1115 = vrot.lane.b32.xlu0 %v985, 92
        %v1116 = vpop.permute.xlu0 %1115
        %1117 = vrot.lane.b32.xlu0 %v997, 92
        %v1118 = vpop.permute.xlu0 %1117
        %1119 = vrot.lane.b32.xlu0 %v996, 92
        %v1120 = vpop.permute.xlu0 %1119
        %1121 = vrot.lane.b32.xlu0 %v987, 92
        %v1122 = vpop.permute.xlu0 %1121
        %1123 = vrot.lane.b32.xlu0 %v998, 92
        %v1124 = vpop.permute.xlu0 %1123
        %v1125 = vsel %vm687, %v1114, %v1116
        %v1126 = vsel %vm687, %v1116, %v1118
        %v1127 = vsel %vm687, %v1120, %v1122
        %v1128 = vsel %vm687, %v1122, %v1124
        %1135 = vrot.lane.b32.xlu0 %v995, 91
        %v1136 = vpop.permute.xlu0 %1135
        %1137 = vrot.lane.b32.xlu0 %v985, 91
        %v1138 = vpop.permute.xlu0 %1137
        %1139 = vrot.lane.b32.xlu0 %v997, 91
        %v1140 = vpop.permute.xlu0 %1139
        %1141 = vrot.lane.b32.xlu0 %v996, 91
        %v1142 = vpop.permute.xlu0 %1141
        %1143 = vrot.lane.b32.xlu0 %v987, 91
        %v1144 = vpop.permute.xlu0 %1143
        %1145 = vrot.lane.b32.xlu0 %v998, 91
        %v1146 = vpop.permute.xlu0 %1145
        %v1147 = vsel %vm710, %v1136, %v1138
        %v1148 = vsel %vm710, %v1138, %v1140
        %v1149 = vsel %vm710, %v1142, %v1144
        %v1150 = vsel %vm710, %v1144, %v1146
        %1157 = vrot.lane.b32.xlu0 %v995, 90
        %v1158 = vpop.permute.xlu0 %1157
        %1159 = vrot.lane.b32.xlu0 %v985, 90
        %v1160 = vpop.permute.xlu0 %1159
        %1161 = vrot.lane.b32.xlu0 %v997, 90
        %v1162 = vpop.permute.xlu0 %1161
        %1163 = vrot.lane.b32.xlu0 %v996, 90
        %v1164 = vpop.permute.xlu0 %1163
        %1165 = vrot.lane.b32.xlu0 %v987, 90
        %v1166 = vpop.permute.xlu0 %1165
        %1167 = vrot.lane.b32.xlu0 %v998, 90
        %v1168 = vpop.permute.xlu0 %1167
        %v1169 = vsel %vm733, %v1158, %v1160
        %v1170 = vsel %vm733, %v1160, %v1162
        %v1171 = vsel %vm733, %v1164, %v1166
        %v1172 = vsel %vm733, %v1166, %v1168
        %v1179 = vld [vmem:[%s2] sm:$0xff]
        %v1180 = vld [vmem:[%s2 + $0x8] sm:$0xff]
        %v1181 = vld [vmem:[%s2 + $0x10] sm:$0xff]
        %v1182 = vld [vmem:[%s2 + $0x18] sm:$0xff]
        %v1183 = vld [vmem:[%s2 + $0x20] sm:$0xff]
        %v1184 = vld [vmem:[%s2 + $0x28] sm:$0xff]
        %v1185 = vld [vmem:[%s2 + $0x30] sm:$0xff]
        %v1186 = vld [vmem:[%s2 + $0x38] sm:$0xff]
        %v1188 = vsel %vm748, %v1180, 0
        %v1191 = vsel %vm748, %v1182, 0
        %v1194 = vsel %vm748, %v1184, 0
        %v1197 = vsel %vm748, %v1186, 0
        %1199 = vmatprep.subr.mxu0 %v985
        %1200 = vmatpush1.msra.mxu0 %v995
        %1201 = vmatprep.subr.mxu0 %v987
        %1202 = vmatpush1.msra.mxu0 %v996
        %1203 = vmatprep.subr.mxu0 %v1016
        %1204 = vmatpush1.msra.mxu0 %v1015
        %1205 = vmatprep.subr.mxu0 %v1018
        %1206 = vmatpush1.msra.mxu0 %v1017
        %1207 = vmatprep.subr.mxu0 %v1038
        %1208 = vmatpush1.msra.mxu0 %v1037
        %1209 = vmatprep.subr.mxu0 %v1040
        %1210 = vmatpush1.msra.mxu0 %v1039
        %1211 = vmatprep.subr.mxu0 %v1060
        %1212 = vmatpush1.msra.mxu0 %v1059
        %1213 = vmatprep.subr.mxu0 %v1062
        %1214 = vmatpush1.msra.mxu0 %v1061
        %1215 = vmatprep.subr.mxu0 %v1082
        %1216 = vmatpush1.msra.mxu0 %v1081
        %1217 = vmatprep.subr.mxu0 %v1084
        %1218 = vmatpush1.msra.mxu0 %v1083
        %1219 = vmatprep.subr.mxu0 %v1104
        %1220 = vmatpush1.msra.mxu0 %v1103
        %1221 = vmatprep.subr.mxu0 %v1106
        %1222 = vmatpush1.msra.mxu0 %v1105
        %1223 = vmatprep.subr.mxu0 %v1126
        %1224 = vmatpush1.msra.mxu0 %v1125
        %1225 = vmatprep.subr.mxu0 %v1128
        %1226 = vmatpush1.msra.mxu0 %v1127
        %1227 = vmatprep.subr.mxu0 %v1148
        %1228 = vmatpush1.msra.mxu0 %v1147
        %1229 = vmatprep.subr.mxu0 %v1150
        %1230 = vmatpush1.msra.mxu0 %v1149
        %1231 = vmatprep.subr.mxu0 %v1170
        %1232 = vmatpush1.msra.mxu0 %v1169
        %1233 = vmatprep.subr.mxu0 %v1172
        %1234 = vmatpush1.msra.mxu0 %v1171
        %1235 = vmatprep.subr.mxu0 0.0
        %1236 = vmatpush1.msra.mxu0 0.0
        %1237 = vmatprep.subr.mxu0 0.0
        %1238 = vmatpush1.msra.mxu0 0.0
        %1239 = vmatprep.subr.mxu0 0.0
        %1240 = vmatpush1.msra.mxu0 0.0
        %1241 = vmatprep.subr.mxu0 0.0
        %1242 = vmatpush1.msra.mxu0 0.0
        %1243 = vmatprep.subr.mxu0 0.0
        %1244 = vmatpush1.msra.mxu0 0.0
        %1245 = vmatprep.subr.mxu0 0.0
        %1246 = vmatpush1.msra.mxu0 0.0
        %1247 = vmatprep.subr.mxu0 0.0
        %1248 = vmatpush1.msra.mxu0 0.0
        %1249 = vmatprep.subr.mxu0 0.0
        %1250 = vmatpush1.msra.mxu0 0.0
        %1251 = vmatprep.subr.mxu0 0.0
        %1252 = vmatpush1.msra.mxu0 0.0
        %1253 = vmatprep.subr.mxu0 0.0
        %1254 = vmatpush1.msra.mxu0 0.0
        %1255 = vmatprep.subr.mxu0 0.0
        %1256 = vmatpush1.msra.mxu0 0.0
        %1257 = vmatprep.subr.mxu0 0.0
        %1258 = vmatpush1.msra.mxu0 0.0
        %1259 = vmatprep.subr.mxu0 0.0
        %1260 = vmatpush1.msra.mxu0 0.0
        %1261 = vmatprep.subr.mxu0 0.0
        %1262 = vmatpush1.msra.mxu0 0.0
        %1263 = vmatprep.mubr.f32.mxu0 %v1188
        %1264 = vmatmul.mubr.f32.gmra.mrb[0].mxu0 %v1179
        %v1265 = vpop.f32.mrb[0].mxu0
        %v1266 = vadd.f32 0.0, %v1265
        %v1267 = vpop.f32.mrb[0].mxu0
        %v1268 = vadd.f32 0.0, %v1267
        %1269 = vmatprep.mubr.f32.mxu0 %v1191
        %1270 = vmatmul.mubr.f32.gmra.mrb[0].mxu0 %v1181
        %v1271 = vpop.f32.mrb[0].mxu0
        %v1272 = vadd.f32 0.0, %v1271
        %v1273 = vpop.f32.mrb[0].mxu0
        %v1274 = vadd.f32 0.0, %v1273
        %1275 = vmatprep.mubr.f32.mxu0 %v1194
        %1276 = vmatmul.mubr.f32.gmra.mrb[0].mxu0 %v1183
        %v1277 = vpop.f32.mrb[0].mxu0
        %v1278 = vadd.f32 0.0, %v1277
        %v1279 = vpop.f32.mrb[0].mxu0
        %v1280 = vadd.f32 0.0, %v1279
        %1281 = vmatprep.mubr.f32.mxu0 %v1197
        %1282 = vmatmul.mubr.f32.gmra.mrb[0].mxu0 %v1185
        %v1283 = vpop.f32.mrb[0].mxu0
        %v1284 = vadd.f32 0.0, %v1283
        %v1285 = vpop.f32.mrb[0].mxu0
        %v1286 = vadd.f32 0.0, %v1285
        %1287 = vdwg.mxu0
        %1288 = vmatprep.subr.mxu0 0.0
        %1289 = vmatpush1.msra.mxu0 %v997
        %1290 = vmatprep.subr.mxu0 0.0
        %1291 = vmatpush1.msra.mxu0 %v998
        %1292 = vmatprep.subr.mxu0 0.0
        %1293 = vmatpush1.msra.mxu0 %v1008
        %1294 = vmatprep.subr.mxu0 0.0
        %1295 = vmatpush1.msra.mxu0 %v1014
        %1296 = vmatprep.subr.mxu0 0.0
        %1297 = vmatpush1.msra.mxu0 %v1030
        %1298 = vmatprep.subr.mxu0 0.0
        %1299 = vmatpush1.msra.mxu0 %v1036
        %1300 = vmatprep.subr.mxu0 0.0
        %1301 = vmatpush1.msra.mxu0 %v1052
        %1302 = vmatprep.subr.mxu0 0.0
        %1303 = vmatpush1.msra.mxu0 %v1058
        %1304 = vmatprep.subr.mxu0 0.0
        %1305 = vmatpush1.msra.mxu0 %v1074
        %1306 = vmatprep.subr.mxu0 0.0
        %1307 = vmatpush1.msra.mxu0 %v1080
        %1308 = vmatprep.subr.mxu0 0.0
        %1309 = vmatpush1.msra.mxu0 %v1096
        %1310 = vmatprep.subr.mxu0 0.0
        %1311 = vmatpush1.msra.mxu0 %v1102
        %1312 = vmatprep.subr.mxu0 0.0
        %1313 = vmatpush1.msra.mxu0 %v1118
        %1314 = vmatprep.subr.mxu0 0.0
        %1315 = vmatpush1.msra.mxu0 %v1124
        %1316 = vmatprep.subr.mxu0 0.0
        %1317 = vmatpush1.msra.mxu0 %v1140
        %1318 = vmatprep.subr.mxu0 0.0
        %1319 = vmatpush1.msra.mxu0 %v1146
        %1320 = vmatprep.subr.mxu0 0.0
        %1321 = vmatpush1.msra.mxu0 %v1162
        %1322 = vmatprep.subr.mxu0 0.0
        %1323 = vmatpush1.msra.mxu0 %v1168
        %1324 = vmatprep.subr.mxu0 0.0
        %1325 = vmatpush1.msra.mxu0 0.0
        %1326 = vmatprep.subr.mxu0 0.0
        %1327 = vmatpush1.msra.mxu0 0.0
        %1328 = vmatprep.subr.mxu0 0.0
        %1329 = vmatpush1.msra.mxu0 0.0
        %1330 = vmatprep.subr.mxu0 0.0
        %1331 = vmatpush1.msra.mxu0 0.0
        %1332 = vmatprep.subr.mxu0 0.0
        %1333 = vmatpush1.msra.mxu0 0.0
        %1334 = vmatprep.subr.mxu0 0.0
        %1335 = vmatpush1.msra.mxu0 0.0
        %1336 = vmatprep.subr.mxu0 0.0
        %1337 = vmatpush1.msra.mxu0 0.0
        %1338 = vmatprep.subr.mxu0 0.0
        %1339 = vmatpush1.msra.mxu0 0.0
        %1340 = vmatprep.subr.mxu0 0.0
        %1341 = vmatpush1.msra.mxu0 0.0
        %1342 = vmatprep.subr.mxu0 0.0
        %1343 = vmatpush1.msra.mxu0 0.0
        %1344 = vmatprep.subr.mxu0 0.0
        %1345 = vmatpush1.msra.mxu0 0.0
        %1346 = vmatprep.subr.mxu0 0.0
        %1347 = vmatpush1.msra.mxu0 0.0
        %1348 = vmatprep.subr.mxu0 0.0
        %1349 = vmatpush1.msra.mxu0 0.0
        %1350 = vmatprep.subr.mxu0 0.0
        %1351 = vmatpush1.msra.mxu0 0.0
        %1352 = vmatprep.mubr.f32.mxu0 %v1188
        %1353 = vmatmul.mubr.f32.gmra.mrb[0].mxu0 %v1179
        %v1354 = vpop.f32.mrb[0].mxu0
        %v1355 = vadd.f32 0.0, %v1354
        %v1356 = vpop.f32.mrb[0].mxu0
        %1357 = vmatprep.mubr.f32.mxu0 %v1191
        %1358 = vmatmul.mubr.f32.gmra.mrb[0].mxu0 %v1181
        %v1359 = vpop.f32.mrb[0].mxu0
        %v1360 = vadd.f32 0.0, %v1359
        %v1361 = vpop.f32.mrb[0].mxu0
        %1362 = vmatprep.mubr.f32.mxu0 %v1194
        %1363 = vmatmul.mubr.f32.gmra.mrb[0].mxu0 %v1183
        %v1364 = vpop.f32.mrb[0].mxu0
        %v1365 = vadd.f32 0.0, %v1364
        %v1366 = vpop.f32.mrb[0].mxu0
        %1367 = vmatprep.mubr.f32.mxu0 %v1197
        %1368 = vmatmul.mubr.f32.gmra.mrb[0].mxu0 %v1185
        %v1369 = vpop.f32.mrb[0].mxu0
        %v1370 = vadd.f32 0.0, %v1369
        %v1371 = vpop.f32.mrb[0].mxu0
        %1372 = vdwg.mxu0
        %v1373 = vld [vmem:[%s10] sm:$0xff]
        %v1374 = vld [vmem:[%s10 + $0x8] sm:$0xff]
        %v1375 = vld [vmem:[%s10 + $0x10] sm:$0xff]
        %v1376 = vld [vmem:[%s10 + $0x18] sm:$0xff]
        %v1377 = vld [vmem:[%s10 + $0x20] sm:$0xff]
        %v1378 = vld [vmem:[%s10 + $0x28] sm:$0xff]
        %v1379 = vld [vmem:[%s10 + $0x30] sm:$0xff]
        %v1380 = vld [vmem:[%s10 + $0x38] sm:$0xff]
        %v1381 = vld [vmem:[%s10 + $0x40] sm:$0xff]
        %v1382 = vld [vmem:[%s10 + $0x48] sm:$0xff]
        %v1383 = vld [vmem:[%s10 + $0x50] sm:$0xff]
        %v1384 = vld [vmem:[%s10 + $0x58] sm:$0xff]
        %v1385 = vld [vmem:[%s10 + $0x60] sm:$0xff]
        %v1386 = vld [vmem:[%s10 + $0x68] sm:$0xff]
        %v1387 = vld [vmem:[%s10 + $0x70] sm:$0xff]
        %v1388 = vld [vmem:[%s10 + $0x78] sm:$0xff]
        %v1389 = vld [vmem:[%s10 + $0x80] sm:$0xff]
        %v1390 = vld [vmem:[%s10 + $0x88] sm:$0xff]
        %v1391 = vld [vmem:[%s10 + $0x90] sm:$0xff]
        %v1392 = vld [vmem:[%s10 + $0x98] sm:$0xff]
        %v1393 = vld [vmem:[%s10 + $0xa0] sm:$0xff]
        %v1394 = vld [vmem:[%s10 + $0xa8] sm:$0xff]
        %v1395 = vld [vmem:[%s10 + $0xb0] sm:$0xff]
        %v1396 = vld [vmem:[%s10 + $0xb8] sm:$0xff]
        %v1397 = vld [vmem:[%s10 + $0xc0] sm:$0xff]
        %v1398 = vld [vmem:[%s10 + $0xc8] sm:$0xff]
        %v1399 = vld [vmem:[%s10 + $0xd0] sm:$0xff]
        %v1400 = vld [vmem:[%s10 + $0xd8] sm:$0xff]
        %v1401 = vld [vmem:[%s10 + $0xe0] sm:$0xff]
        %v1402 = vld [vmem:[%s10 + $0xe8] sm:$0xff]
        %v1403 = vld [vmem:[%s10 + $0xf0] sm:$0xff]
        %v1404 = vld [vmem:[%s10 + $0xf8] sm:$0xff]
        %v1405 = vld [vmem:[%s10 + $0x100] sm:$0xff]
        %v1406 = vld [vmem:[%s10 + $0x108] sm:$0xff]
        %v1407 = vld [vmem:[%s10 + $0x110] sm:$0xff]
        %v1408 = vld [vmem:[%s10 + $0x118] sm:$0xff]
        %v1409 = vld [vmem:[%s10 + $0x120] sm:$0xff]
        %v1410 = vld [vmem:[%s10 + $0x128] sm:$0xff]
        %v1411 = vld [vmem:[%s10 + $0x130] sm:$0xff]
        %v1412 = vld [vmem:[%s10 + $0x138] sm:$0xff]
        %v1413 = vld [vmem:[%s10 + $0x140] sm:$0xf]
        %1420 = vrot.lane.b32.xlu0 %v439, 19
        %v1421 = vpop.permute.xlu0 %1420
        %1422 = vrot.lane.b32.xlu0 %v440, 19
        %v1423 = vpop.permute.xlu0 %1422
        %1424 = vrot.lane.b32.xlu0 %v441, 19
        %v1425 = vpop.permute.xlu0 %1424
        %1426 = vrot.lane.b32.xlu0 %v442, 19
        %v1427 = vpop.permute.xlu0 %1426
        %1428 = vrot.lane.b32.xlu0 %v443, 19
        %v1429 = vpop.permute.xlu0 %1428
        %1430 = vrot.lane.b32.xlu0 %v444, 19
        %v1431 = vpop.permute.xlu0 %1430
        %v1432 = vsel %vm540, %v1421, %v1423
        %v1433 = vsel %vm540, %v1423, %v1425
        %v1434 = vsel %vm540, %v1427, %v1429
        %v1435 = vsel %vm540, %v1429, %v1431
        %v1442 = vsel %vm540, 0.0, %v1421
        %v1443 = vsel %vm540, 0.0, %v1427
        %v1444 = vsel %vm553, %v1433, 0.0
        %v1445 = vsel %vm553, %v1435, 0.0
        %1450 = vrot.lane.b32.xlu0 %v1442, 127
        %v1451 = vpop.permute.xlu0 %1450
        %1452 = vrot.lane.b32.xlu0 %v1432, 127
        %v1453 = vpop.permute.xlu0 %1452
        %1454 = vrot.lane.b32.xlu0 %v1444, 127
        %v1455 = vpop.permute.xlu0 %1454
        %1456 = vrot.lane.b32.xlu0 %v1443, 127
        %v1457 = vpop.permute.xlu0 %1456
        %1458 = vrot.lane.b32.xlu0 %v1434, 127
        %v1459 = vpop.permute.xlu0 %1458
        %1460 = vrot.lane.b32.xlu0 %v1445, 127
        %v1461 = vpop.permute.xlu0 %1460
        %v1462 = vsel %vm572, %v1451, %v1453
        %v1463 = vsel %vm572, %v1453, %v1455
        %v1464 = vsel %vm572, %v1457, %v1459
        %v1465 = vsel %vm572, %v1459, %v1461
        %v1472 = vadd.f32 %v1442, %v1462
        %v1473 = vadd.f32 %v1432, %v1463
        %v1474 = vadd.f32 %v1444, %v1455
        %v1475 = vadd.f32 %v1443, %v1464
        %v1476 = vadd.f32 %v1434, %v1465
        %v1477 = vadd.f32 %v1445, %v1461
        %1478 = vrot.lane.b32.xlu0 %v1442, 126
        %v1479 = vpop.permute.xlu0 %1478
        %1480 = vrot.lane.b32.xlu0 %v1432, 126
        %v1481 = vpop.permute.xlu0 %1480
        %1482 = vrot.lane.b32.xlu0 %v1444, 126
        %v1483 = vpop.permute.xlu0 %1482
        %1484 = vrot.lane.b32.xlu0 %v1443, 126
        %v1485 = vpop.permute.xlu0 %1484
        %1486 = vrot.lane.b32.xlu0 %v1434, 126
        %v1487 = vpop.permute.xlu0 %1486
        %1488 = vrot.lane.b32.xlu0 %v1445, 126
        %v1489 = vpop.permute.xlu0 %1488
        %v1490 = vsel %vm595, %v1479, %v1481
        %v1491 = vsel %vm595, %v1481, %v1483
        %v1492 = vsel %vm595, %v1485, %v1487
        %v1493 = vsel %vm595, %v1487, %v1489
        %v1500 = vadd.f32 %v1472, %v1490
        %v1501 = vadd.f32 %v1473, %v1491
        %v1502 = vadd.f32 %v1474, %v1483
        %v1503 = vadd.f32 %v1475, %v1492
        %v1504 = vadd.f32 %v1476, %v1493
        %v1505 = vadd.f32 %v1477, %v1489
        %1506 = vrot.lane.b32.xlu0 %v1442, 110
        %v1507 = vpop.permute.xlu0 %1506
        %1508 = vrot.lane.b32.xlu0 %v1432, 110
        %v1509 = vpop.permute.xlu0 %1508
        %1510 = vrot.lane.b32.xlu0 %v1444, 110
        %v1511 = vpop.permute.xlu0 %1510
        %1512 = vrot.lane.b32.xlu0 %v1443, 110
        %v1513 = vpop.permute.xlu0 %1512
        %1514 = vrot.lane.b32.xlu0 %v1434, 110
        %v1515 = vpop.permute.xlu0 %1514
        %1516 = vrot.lane.b32.xlu0 %v1445, 110
        %v1517 = vpop.permute.xlu0 %1516
        %v1518 = vsel %vm618, %v1507, %v1509
        %v1519 = vsel %vm618, %v1509, %v1511
        %v1520 = vsel %vm618, %v1513, %v1515
        %v1521 = vsel %vm618, %v1515, %v1517
        %v1528 = vadd.f32 %v1500, %v1518
        %v1529 = vadd.f32 %v1501, %v1519
        %v1530 = vadd.f32 %v1502, %v1511
        %v1531 = vadd.f32 %v1503, %v1520
        %v1532 = vadd.f32 %v1504, %v1521
        %v1533 = vadd.f32 %v1505, %v1517
        %1534 = vrot.lane.b32.xlu0 %v1442, 109
        %v1535 = vpop.permute.xlu0 %1534
        %1536 = vrot.lane.b32.xlu0 %v1432, 109
        %v1537 = vpop.permute.xlu0 %1536
        %1538 = vrot.lane.b32.xlu0 %v1444, 109
        %v1539 = vpop.permute.xlu0 %1538
        %1540 = vrot.lane.b32.xlu0 %v1443, 109
        %v1541 = vpop.permute.xlu0 %1540
        %1542 = vrot.lane.b32.xlu0 %v1434, 109
        %v1543 = vpop.permute.xlu0 %1542
        %1544 = vrot.lane.b32.xlu0 %v1445, 109
        %v1545 = vpop.permute.xlu0 %1544
        %v1546 = vsel %vm641, %v1535, %v1537
        %v1547 = vsel %vm641, %v1537, %v1539
        %v1548 = vsel %vm641, %v1541, %v1543
        %v1549 = vsel %vm641, %v1543, %v1545
        %v1556 = vadd.f32 %v1528, %v1546
        %v1557 = vadd.f32 %v1529, %v1547
        %v1558 = vadd.f32 %v1530, %v1539
        %v1559 = vadd.f32 %v1531, %v1548
        %v1560 = vadd.f32 %v1532, %v1549
        %v1561 = vadd.f32 %v1533, %v1545
        %1562 = vrot.lane.b32.xlu0 %v1442, 108
        %v1563 = vpop.permute.xlu0 %1562
        %1564 = vrot.lane.b32.xlu0 %v1432, 108
        %v1565 = vpop.permute.xlu0 %1564
        %1566 = vrot.lane.b32.xlu0 %v1444, 108
        %v1567 = vpop.permute.xlu0 %1566
        %1568 = vrot.lane.b32.xlu0 %v1443, 108
        %v1569 = vpop.permute.xlu0 %1568
        %1570 = vrot.lane.b32.xlu0 %v1434, 108
        %v1571 = vpop.permute.xlu0 %1570
        %1572 = vrot.lane.b32.xlu0 %v1445, 108
        %v1573 = vpop.permute.xlu0 %1572
        %v1574 = vsel %vm664, %v1563, %v1565
        %v1575 = vsel %vm664, %v1565, %v1567
        %v1576 = vsel %vm664, %v1569, %v1571
        %v1577 = vsel %vm664, %v1571, %v1573
        %v1584 = vadd.f32 %v1556, %v1574
        %v1585 = vadd.f32 %v1557, %v1575
        %v1586 = vadd.f32 %v1558, %v1567
        %v1587 = vadd.f32 %v1559, %v1576
        %v1588 = vadd.f32 %v1560, %v1577
        %v1589 = vadd.f32 %v1561, %v1573
        %1590 = vrot.lane.b32.xlu0 %v1442, 92
        %v1591 = vpop.permute.xlu0 %1590
        %1592 = vrot.lane.b32.xlu0 %v1432, 92
        %v1593 = vpop.permute.xlu0 %1592
        %1594 = vrot.lane.b32.xlu0 %v1444, 92
        %v1595 = vpop.permute.xlu0 %1594
        %1596 = vrot.lane.b32.xlu0 %v1443, 92
        %v1597 = vpop.permute.xlu0 %1596
        %1598 = vrot.lane.b32.xlu0 %v1434, 92
        %v1599 = vpop.permute.xlu0 %1598
        %1600 = vrot.lane.b32.xlu0 %v1445, 92
        %v1601 = vpop.permute.xlu0 %1600
        %v1602 = vsel %vm687, %v1591, %v1593
        %v1603 = vsel %vm687, %v1593, %v1595
        %v1604 = vsel %vm687, %v1597, %v1599
        %v1605 = vsel %vm687, %v1599, %v1601
        %v1612 = vadd.f32 %v1584, %v1602
        %v1613 = vadd.f32 %v1585, %v1603
        %v1614 = vadd.f32 %v1586, %v1595
        %v1615 = vadd.f32 %v1587, %v1604
        %v1616 = vadd.f32 %v1588, %v1605
        %v1617 = vadd.f32 %v1589, %v1601
        %1618 = vrot.lane.b32.xlu0 %v1442, 91
        %v1619 = vpop.permute.xlu0 %1618
        %1620 = vrot.lane.b32.xlu0 %v1432, 91
        %v1621 = vpop.permute.xlu0 %1620
        %1622 = vrot.lane.b32.xlu0 %v1444, 91
        %v1623 = vpop.permute.xlu0 %1622
        %1624 = vrot.lane.b32.xlu0 %v1443, 91
        %v1625 = vpop.permute.xlu0 %1624
        %1626 = vrot.lane.b32.xlu0 %v1434, 91
        %v1627 = vpop.permute.xlu0 %1626
        %1628 = vrot.lane.b32.xlu0 %v1445, 91
        %v1629 = vpop.permute.xlu0 %1628
        %v1630 = vsel %vm710, %v1619, %v1621
        %v1631 = vsel %vm710, %v1621, %v1623
        %v1632 = vsel %vm710, %v1625, %v1627
        %v1633 = vsel %vm710, %v1627, %v1629
        %v1640 = vadd.f32 %v1612, %v1630
        %v1641 = vadd.f32 %v1613, %v1631
        %v1642 = vadd.f32 %v1614, %v1623
        %v1643 = vadd.f32 %v1615, %v1632
        %v1644 = vadd.f32 %v1616, %v1633
        %v1645 = vadd.f32 %v1617, %v1629
        %1646 = vrot.lane.b32.xlu0 %v1442, 90
        %v1647 = vpop.permute.xlu0 %1646
        %1648 = vrot.lane.b32.xlu0 %v1432, 90
        %v1649 = vpop.permute.xlu0 %1648
        %1650 = vrot.lane.b32.xlu0 %v1444, 90
        %v1651 = vpop.permute.xlu0 %1650
        %1652 = vrot.lane.b32.xlu0 %v1443, 90
        %v1653 = vpop.permute.xlu0 %1652
        %1654 = vrot.lane.b32.xlu0 %v1434, 90
        %v1655 = vpop.permute.xlu0 %1654
        %1656 = vrot.lane.b32.xlu0 %v1445, 90
        %v1657 = vpop.permute.xlu0 %1656
        %v1658 = vsel %vm733, %v1647, %v1649
        %v1659 = vsel %vm733, %v1649, %v1651
        %v1660 = vsel %vm733, %v1653, %v1655
        %v1661 = vsel %vm733, %v1655, %v1657
        %v1668 = vadd.f32 %v1640, %v1658
        %v1669 = vadd.f32 %v1641, %v1659
        %v1670 = vadd.f32 %v1642, %v1651
        %v1671 = vadd.f32 %v1643, %v1660
        %v1672 = vadd.f32 %v1644, %v1661
        %v1673 = vadd.f32 %v1645, %v1657
        %v1674 = vld [vmem:[%s11] sm:$0xff]
        %v1675 = vld [vmem:[%s11 + $0x8] sm:$0xff]
        %v1676 = vld [vmem:[%s11 + $0x10] sm:$0xff]
        %v1677 = vld [vmem:[%s11 + $0x18] sm:$0xff]
        %v1678 = vld [vmem:[%s11 + $0x20] sm:$0xff]
        %v1679 = vld [vmem:[%s11 + $0x28] sm:$0xff]
        %v1680 = vld [vmem:[%s11 + $0x30] sm:$0xff]
        %v1681 = vld [vmem:[%s11 + $0x38] sm:$0xff]
        %v1682 = vld [vmem:[%s11 + $0x40] sm:$0xff]
        %v1683 = vld [vmem:[%s11 + $0x48] sm:$0xff]
        %v1684 = vld [vmem:[%s11 + $0x50] sm:$0xff]
        %v1685 = vld [vmem:[%s11 + $0x58] sm:$0xff]
        %v1686 = vld [vmem:[%s11 + $0x60] sm:$0xff]
        %v1687 = vld [vmem:[%s11 + $0x68] sm:$0xff]
        %v1688 = vld [vmem:[%s11 + $0x70] sm:$0xff]
        %v1689 = vld [vmem:[%s11 + $0x78] sm:$0xff]
        %v1690 = vld [vmem:[%s11 + $0x80] sm:$0xff]
        %v1691 = vld [vmem:[%s11 + $0x88] sm:$0xff]
        %v1692 = vld [vmem:[%s11 + $0x90] sm:$0xff]
        %v1693 = vld [vmem:[%s11 + $0x98] sm:$0xff]
        %v1694 = vld [vmem:[%s11 + $0xa0] sm:$0xff]
        %v1695 = vld [vmem:[%s11 + $0xa8] sm:$0xff]
        %v1696 = vld [vmem:[%s11 + $0xb0] sm:$0xff]
        %v1697 = vld [vmem:[%s11 + $0xb8] sm:$0xff]
        %v1698 = vld [vmem:[%s11 + $0xc0] sm:$0xff]
        %v1699 = vld [vmem:[%s11 + $0xc8] sm:$0xff]
        %v1700 = vld [vmem:[%s11 + $0xd0] sm:$0xff]
        %v1701 = vld [vmem:[%s11 + $0xd8] sm:$0xff]
        %v1702 = vld [vmem:[%s11 + $0xe0] sm:$0xff]
        %v1703 = vld [vmem:[%s11 + $0xe8] sm:$0xff]
        %v1704 = vld [vmem:[%s11 + $0xf0] sm:$0xff]
        %v1705 = vld [vmem:[%s11 + $0xf8] sm:$0xff]
        %v1706 = vld [vmem:[%s11 + $0x100] sm:$0xff]
        %v1707 = vld [vmem:[%s11 + $0x108] sm:$0xff]
        %v1708 = vld [vmem:[%s11 + $0x110] sm:$0xff]
        %v1709 = vld [vmem:[%s11 + $0x118] sm:$0xff]
        %v1710 = vld [vmem:[%s11 + $0x120] sm:$0xff]
        %v1711 = vld [vmem:[%s11 + $0x128] sm:$0xff]
        %v1712 = vld [vmem:[%s11 + $0x130] sm:$0xff]
        %v1713 = vld [vmem:[%s11 + $0x138] sm:$0xff]
        %v1714 = vld [vmem:[%s11 + $0x140] sm:$0xf]
        %vm1715 = vcmask 556032
        %v1717 = vsel %vm1715, %v1670, 0
        %v1720 = vsel %vm1715, %v1673, 0
        %vm1722 = vcmask 1043456
        %v1724 = vsel %vm1722, %v1714, 0
        %1726 = vmatprep.subr.mxu0 0.0
        %1727 = vmatpush1.msra.mxu0 %v1674
        %1728 = vmatprep.subr.mxu0 0.0
        %1729 = vmatpush1.msra.mxu0 %v1675
        %1730 = vmatprep.subr.mxu0 0.0
        %1731 = vmatpush1.msra.mxu0 %v1676
        %1732 = vmatprep.subr.mxu0 0.0
        %1733 = vmatpush1.msra.mxu0 %v1677
        %1734 = vmatprep.subr.mxu0 0.0
        %1735 = vmatpush1.msra.mxu0 %v1678
        %1736 = vmatprep.subr.mxu0 0.0
        %1737 = vmatpush1.msra.mxu0 %v1679
        %1738 = vmatprep.subr.mxu0 0.0
        %1739 = vmatpush1.msra.mxu0 %v1680
        %1740 = vmatprep.subr.mxu0 0.0
        %1741 = vmatpush1.msra.mxu0 %v1681
        %1742 = vmatprep.subr.mxu0 0.0
        %1743 = vmatpush1.msra.mxu0 %v1682
        %1744 = vmatprep.subr.mxu0 0.0
        %1745 = vmatpush1.msra.mxu0 %v1683
        %1746 = vmatprep.subr.mxu0 0.0
        %1747 = vmatpush1.msra.mxu0 %v1684
        %1748 = vmatprep.subr.mxu0 0.0
        %1749 = vmatpush1.msra.mxu0 %v1685
        %1750 = vmatprep.subr.mxu0 0.0
        %1751 = vmatpush1.msra.mxu0 %v1686
        %1752 = vmatprep.subr.mxu0 0.0
        %1753 = vmatpush1.msra.mxu0 %v1687
        %1754 = vmatprep.subr.mxu0 0.0
        %1755 = vmatpush1.msra.mxu0 %v1688
        %1756 = vmatprep.subr.mxu0 0.0
        %1757 = vmatpush1.msra.mxu0 %v1689
        %1758 = vmatprep.subr.mxu0 0.0
        %1759 = vmatpush1.msra.mxu0 %v1690
        %1760 = vmatprep.subr.mxu0 0.0
        %1761 = vmatpush1.msra.mxu0 %v1691
        %1762 = vmatprep.subr.mxu0 0.0
        %1763 = vmatpush1.msra.mxu0 %v1692
        %1764 = vmatprep.subr.mxu0 0.0
        %1765 = vmatpush1.msra.mxu0 %v1693
        %1766 = vmatprep.subr.mxu0 0.0
        %1767 = vmatpush1.msra.mxu0 %v1694
        %1768 = vmatprep.subr.mxu0 0.0
        %1769 = vmatpush1.msra.mxu0 %v1695
        %1770 = vmatprep.subr.mxu0 0.0
        %1771 = vmatpush1.msra.mxu0 %v1696
        %1772 = vmatprep.subr.mxu0 0.0
        %1773 = vmatpush1.msra.mxu0 %v1697
        %1774 = vmatprep.subr.mxu0 0.0
        %1775 = vmatpush1.msra.mxu0 %v1698
        %1776 = vmatprep.subr.mxu0 0.0
        %1777 = vmatpush1.msra.mxu0 %v1699
        %1778 = vmatprep.subr.mxu0 0.0
        %1779 = vmatpush1.msra.mxu0 %v1700
        %1780 = vmatprep.subr.mxu0 0.0
        %1781 = vmatpush1.msra.mxu0 %v1701
        %1782 = vmatprep.subr.mxu0 0.0
        %1783 = vmatpush1.msra.mxu0 %v1702
        %1784 = vmatprep.subr.mxu0 0.0
        %1785 = vmatpush1.msra.mxu0 %v1703
        %1786 = vmatprep.subr.mxu0 0.0
        %1787 = vmatpush1.msra.mxu0 %v1704
        %1788 = vmatprep.subr.mxu0 0.0
        %1789 = vmatpush1.msra.mxu0 %v1705
        %1790 = vmatprep.mubr.f32.mxu0 %v1669
        %1791 = vmatmul.mubr.f32.gmra.mrb[0].mxu0 %v1668
        %v1792 = vpop.f32.mrb[0].mxu0
        %v1793 = vadd.f32 0.0, %v1792
        %v1794 = vpop.f32.mrb[0].mxu0
        %1795 = vmatprep.mubr.f32.mxu0 %v1672
        %1796 = vmatmul.mubr.f32.gmra.mrb[0].mxu0 %v1671
        %v1797 = vpop.f32.mrb[0].mxu0
        %v1798 = vadd.f32 0.0, %v1797
        %v1799 = vpop.f32.mrb[0].mxu0
        %1800 = vdwg.mxu0
        %1801 = vmatprep.subr.mxu0 0.0
        %1802 = vmatpush1.msra.mxu0 %v1706
        %1803 = vmatprep.subr.mxu0 0.0
        %1804 = vmatpush1.msra.mxu0 %v1707
        %1805 = vmatprep.subr.mxu0 0.0
        %1806 = vmatpush1.msra.mxu0 %v1708
        %1807 = vmatprep.subr.mxu0 0.0
        %1808 = vmatpush1.msra.mxu0 %v1709
        %1809 = vmatprep.subr.mxu0 0.0
        %1810 = vmatpush1.msra.mxu0 %v1710
        %1811 = vmatprep.subr.mxu0 0.0
        %1812 = vmatpush1.msra.mxu0 %v1711
        %1813 = vmatprep.subr.mxu0 0.0
        %1814 = vmatpush1.msra.mxu0 %v1712
        %1815 = vmatprep.subr.mxu0 0.0
        %1816 = vmatpush1.msra.mxu0 %v1713
        %1817 = vmatprep.subr.mxu0 0.0
        %1818 = vmatpush1.msra.mxu0 %v1724
        %1819 = vmatprep.subr.mxu0 0.0
        %1820 = vmatpush1.msra.mxu0 0.0
        %1821 = vmatprep.subr.mxu0 0.0
        %1822 = vmatpush1.msra.mxu0 0.0
        %1823 = vmatprep.subr.mxu0 0.0
        %1824 = vmatpush1.msra.mxu0 0.0
        %1825 = vmatprep.subr.mxu0 0.0
        %1826 = vmatpush1.msra.mxu0 0.0
        %1827 = vmatprep.subr.mxu0 0.0
        %1828 = vmatpush1.msra.mxu0 0.0
        %1829 = vmatprep.subr.mxu0 0.0
        %1830 = vmatpush1.msra.mxu0 0.0
        %1831 = vmatprep.subr.mxu0 0.0
        %1832 = vmatpush1.msra.mxu0 0.0
        %1833 = vmatprep.subr.mxu0 0.0
        %1834 = vmatpush1.msra.mxu0 0.0
        %1835 = vmatprep.subr.mxu0 0.0
        %1836 = vmatpush1.msra.mxu0 0.0
        %1837 = vmatprep.subr.mxu0 0.0
        %1838 = vmatpush1.msra.mxu0 0.0
        %1839 = vmatprep.subr.mxu0 0.0
        %1840 = vmatpush1.msra.mxu0 0.0
        %1841 = vmatprep.subr.mxu0 0.0
        %1842 = vmatpush1.msra.mxu0 0.0
        %1843 = vmatprep.subr.mxu0 0.0
        %1844 = vmatpush1.msra.mxu0 0.0
        %1845 = vmatprep.subr.mxu0 0.0
        %1846 = vmatpush1.msra.mxu0 0.0
        %1847 = vmatprep.subr.mxu0 0.0
        %1848 = vmatpush1.msra.mxu0 0.0
        %1849 = vmatprep.subr.mxu0 0.0
        %1850 = vmatpush1.msra.mxu0 0.0
        %1851 = vmatprep.subr.mxu0 0.0
        %1852 = vmatpush1.msra.mxu0 0.0
        %1853 = vmatprep.subr.mxu0 0.0
        %1854 = vmatpush1.msra.mxu0 0.0
        %1855 = vmatprep.subr.mxu0 0.0
        %1856 = vmatpush1.msra.mxu0 0.0
        %1857 = vmatprep.subr.mxu0 0.0
        %1858 = vmatpush1.msra.mxu0 0.0
        %1859 = vmatprep.subr.mxu0 0.0
        %1860 = vmatpush1.msra.mxu0 0.0
        %1861 = vmatprep.subr.mxu0 0.0
        %1862 = vmatpush1.msra.mxu0 0.0
        %1863 = vmatprep.subr.mxu0 0.0
        %1864 = vmatpush1.msra.mxu0 0.0
        %1865 = vmatprep.mubr.f32.mxu0 0.0
        %1866 = vmatmul.mubr.f32.gmra.mrb[0].mxu0 %v1717
        %v1867 = vpop.f32.mrb[0].mxu0
        %v1868 = vadd.f32 %v1793, %v1867
        %v1869 = vpop.f32.mrb[0].mxu0
        %1870 = vmatprep.mubr.f32.mxu0 0.0
        %1871 = vmatmul.mubr.f32.gmra.mrb[0].mxu0 %v1720
        %v1872 = vpop.f32.mrb[0].mxu0
        %v1873 = vadd.f32 %v1798, %v1872
        %v1874 = vpop.f32.mrb[0].mxu0
        %1875 = vdwg.mxu0
        %1878 = vrot.lane.b32.xlu0 %v1868, 11
        %v1879 = vpop.permute.xlu0 %1878
        %1880 = vrot.lane.b32.xlu0 %v1873, 11
        %v1881 = vpop.permute.xlu0 %1880
        %vm1884 = vcmask 89088
        %v1885 = vsel %vm1884, 0.0, %v1879
        %v1886 = vsel %vm1884, 0.0, %v1881
        %vm1887 = vcmask 908288
        %v1888 = vsel %vm1887, %v1885, 0.0
        %v1889 = vsel %vm1887, %v1886, 0.0
        %1892 = vrot.lane.b32.xlu0 %v1888, 127
        %v1893 = vpop.permute.xlu0 %1892
        %1894 = vrot.lane.b32.xlu0 %v1889, 127
        %v1895 = vpop.permute.xlu0 %1894
        %1898 = vrot.lane.b32.xlu0 %v1888, 126
        %v1899 = vpop.permute.xlu0 %1898
        %1900 = vrot.lane.b32.xlu0 %v1889, 126
        %v1901 = vpop.permute.xlu0 %1900
        %1904 = vrot.lane.b32.xlu0 %v1888, 118
        %v1905 = vpop.permute.xlu0 %1904
        %1906 = vrot.lane.b32.xlu0 %v1889, 118
        %v1907 = vpop.permute.xlu0 %1906
        %1910 = vrot.lane.b32.xlu0 %v1888, 117
        %v1911 = vpop.permute.xlu0 %1910
        %1912 = vrot.lane.b32.xlu0 %v1889, 117
        %v1913 = vpop.permute.xlu0 %1912
        %1916 = vrot.lane.b32.xlu0 %v1888, 116
        %v1917 = vpop.permute.xlu0 %1916
        %1918 = vrot.lane.b32.xlu0 %v1889, 116
        %v1919 = vpop.permute.xlu0 %1918
        %1922 = vrot.lane.b32.xlu0 %v1888, 108
        %v1923 = vpop.permute.xlu0 %1922
        %1924 = vrot.lane.b32.xlu0 %v1889, 108
        %v1925 = vpop.permute.xlu0 %1924
        %1928 = vrot.lane.b32.xlu0 %v1888, 107
        %v1929 = vpop.permute.xlu0 %1928
        %1930 = vrot.lane.b32.xlu0 %v1889, 107
        %v1931 = vpop.permute.xlu0 %1930
        %1934 = vrot.lane.b32.xlu0 %v1888, 106
        %v1935 = vpop.permute.xlu0 %1934
        %1936 = vrot.lane.b32.xlu0 %v1889, 106
        %v1937 = vpop.permute.xlu0 %1936
        %v1940 = vld [vmem:[%s3] sm:$0xff]
        %v1941 = vld [vmem:[%s3 + $0x8] sm:$0xff]
        %v1942 = vld [vmem:[%s3 + $0x10] sm:$0xff]
        %v1943 = vld [vmem:[%s3 + $0x18] sm:$0xff]
        %v1944 = vld [vmem:[%s3 + $0x20] sm:$0xff]
        %v1945 = vld [vmem:[%s3 + $0x28] sm:$0xff]
        %v1946 = vld [vmem:[%s3 + $0x30] sm:$0xff]
        %v1947 = vld [vmem:[%s3 + $0x38] sm:$0xff]
        %v1949 = vsel %vm748, %v1941, 0
        %v1952 = vsel %vm748, %v1943, 0
        %v1955 = vsel %vm748, %v1945, 0
        %v1958 = vsel %vm748, %v1947, 0
        %1960 = vmatprep.subr.mxu0 0.0
        %1961 = vmatpush1.msra.mxu0 %v1888
        %1962 = vmatprep.subr.mxu0 0.0
        %1963 = vmatpush1.msra.mxu0 %v1889
        %1964 = vmatprep.subr.mxu0 0.0
        %1965 = vmatpush1.msra.mxu0 %v1893
        %1966 = vmatprep.subr.mxu0 0.0
        %1967 = vmatpush1.msra.mxu0 %v1895
        %1968 = vmatprep.subr.mxu0 0.0
        %1969 = vmatpush1.msra.mxu0 %v1899
        %1970 = vmatprep.subr.mxu0 0.0
        %1971 = vmatpush1.msra.mxu0 %v1901
        %1972 = vmatprep.subr.mxu0 0.0
        %1973 = vmatpush1.msra.mxu0 %v1905
        %1974 = vmatprep.subr.mxu0 0.0
        %1975 = vmatpush1.msra.mxu0 %v1907
        %1976 = vmatprep.subr.mxu0 0.0
        %1977 = vmatpush1.msra.mxu0 %v1911
        %1978 = vmatprep.subr.mxu0 0.0
        %1979 = vmatpush1.msra.mxu0 %v1913
        %1980 = vmatprep.subr.mxu0 0.0
        %1981 = vmatpush1.msra.mxu0 %v1917
        %1982 = vmatprep.subr.mxu0 0.0
        %1983 = vmatpush1.msra.mxu0 %v1919
        %1984 = vmatprep.subr.mxu0 0.0
        %1985 = vmatpush1.msra.mxu0 %v1923
        %1986 = vmatprep.subr.mxu0 0.0
        %1987 = vmatpush1.msra.mxu0 %v1925
        %1988 = vmatprep.subr.mxu0 0.0
        %1989 = vmatpush1.msra.mxu0 %v1929
        %1990 = vmatprep.subr.mxu0 0.0
        %1991 = vmatpush1.msra.mxu0 %v1931
        %1992 = vmatprep.subr.mxu0 0.0
        %1993 = vmatpush1.msra.mxu0 %v1935
        %1994 = vmatprep.subr.mxu0 0.0
        %1995 = vmatpush1.msra.mxu0 %v1937
        %1996 = vmatprep.subr.mxu0 0.0
        %1997 = vmatpush1.msra.mxu0 0.0
        %1998 = vmatprep.subr.mxu0 0.0
        %1999 = vmatpush1.msra.mxu0 0.0
        %2000 = vmatprep.subr.mxu0 0.0
        %2001 = vmatpush1.msra.mxu0 0.0
        %2002 = vmatprep.subr.mxu0 0.0
        %2003 = vmatpush1.msra.mxu0 0.0
        %2004 = vmatprep.subr.mxu0 0.0
        %2005 = vmatpush1.msra.mxu0 0.0
        %2006 = vmatprep.subr.mxu0 0.0
        %2007 = vmatpush1.msra.mxu0 0.0
        %2008 = vmatprep.subr.mxu0 0.0
        %2009 = vmatpush1.msra.mxu0 0.0
        %2010 = vmatprep.subr.mxu0 0.0
        %2011 = vmatpush1.msra.mxu0 0.0
        %2012 = vmatprep.subr.mxu0 0.0
        %2013 = vmatpush1.msra.mxu0 0.0
        %2014 = vmatprep.subr.mxu0 0.0
        %2015 = vmatpush1.msra.mxu0 0.0
        %2016 = vmatprep.subr.mxu0 0.0
        %2017 = vmatpush1.msra.mxu0 0.0
        %2018 = vmatprep.subr.mxu0 0.0
        %2019 = vmatpush1.msra.mxu0 0.0
        %2020 = vmatprep.subr.mxu0 0.0
        %2021 = vmatpush1.msra.mxu0 0.0
        %2022 = vmatprep.subr.mxu0 0.0
        %2023 = vmatpush1.msra.mxu0 0.0
        %2024 = vmatprep.mubr.f32.mxu0 %v1949
        %2025 = vmatmul.mubr.f32.gmra.mrb[0].mxu0 %v1940
        %v2026 = vpop.f32.mrb[0].mxu0
        %v2027 = vadd.f32 0.0, %v2026
        %v2028 = vpop.f32.mrb[0].mxu0
        %2029 = vmatprep.mubr.f32.mxu0 %v1952
        %2030 = vmatmul.mubr.f32.gmra.mrb[0].mxu0 %v1942
        %v2031 = vpop.f32.mrb[0].mxu0
        %v2032 = vadd.f32 0.0, %v2031
        %v2033 = vpop.f32.mrb[0].mxu0
        %2034 = vmatprep.mubr.f32.mxu0 %v1955
        %2035 = vmatmul.mubr.f32.gmra.mrb[0].mxu0 %v1944
        %v2036 = vpop.f32.mrb[0].mxu0
        %v2037 = vadd.f32 0.0, %v2036
        %v2038 = vpop.f32.mrb[0].mxu0
        %2039 = vmatprep.mubr.f32.mxu0 %v1958
        %2040 = vmatmul.mubr.f32.gmra.mrb[0].mxu0 %v1946
        %v2041 = vpop.f32.mrb[0].mxu0
        %v2042 = vadd.f32 0.0, %v2041
        %v2043 = vpop.f32.mrb[0].mxu0
        %2044 = vdwg.mxu0
        %v2045 = vld [vmem:[%s12] sm:$0xff]
        %v2046 = vld [vmem:[%s12 + $0x8] sm:$0xff]
        %v2047 = vld [vmem:[%s12 + $0x10] sm:$0xff]
        %v2048 = vld [vmem:[%s12 + $0x18] sm:$0xff]
        %v2049 = vld [vmem:[%s12 + $0x20] sm:$0xff]
        %v2050 = vld [vmem:[%s12 + $0x28] sm:$0xff]
        %v2051 = vld [vmem:[%s12 + $0x30] sm:$0xff]
        %v2052 = vld [vmem:[%s12 + $0x38] sm:$0xff]
        %v2053 = vld [vmem:[%s12 + $0x40] sm:$0xff]
        %v2054 = vld [vmem:[%s12 + $0x48] sm:$0xff]
        %v2055 = vld [vmem:[%s12 + $0x50] sm:$0xff]
        %v2056 = vld [vmem:[%s12 + $0x58] sm:$0xff]
        %v2057 = vld [vmem:[%s12 + $0x60] sm:$0xf]
        %vm2058 = vcmask 818176
        %v2060 = vsel %vm2058, %v2027, 0
        %v2063 = vsel %vm2058, %v2032, 0
        %v2066 = vsel %vm2058, %v2037, 0
        %v2069 = vsel %vm2058, %v2042, 0
        %v2072 = vsel %vm1722, %v2057, 0
        %2074 = vmatprep.subr.mxu0 0.0
        %2075 = vmatpush1.msra.mxu0 %v2045
        %2076 = vmatprep.subr.mxu0 0.0
        %2077 = vmatpush1.msra.mxu0 %v2046
        %2078 = vmatprep.subr.mxu0 0.0
        %2079 = vmatpush1.msra.mxu0 %v2047
        %2080 = vmatprep.subr.mxu0 0.0
        %2081 = vmatpush1.msra.mxu0 %v2048
        %2082 = vmatprep.subr.mxu0 0.0
        %2083 = vmatpush1.msra.mxu0 %v2049
        %2084 = vmatprep.subr.mxu0 0.0
        %2085 = vmatpush1.msra.mxu0 %v2050
        %2086 = vmatprep.subr.mxu0 0.0
        %2087 = vmatpush1.msra.mxu0 %v2051
        %2088 = vmatprep.subr.mxu0 0.0
        %2089 = vmatpush1.msra.mxu0 %v2052
        %2090 = vmatprep.subr.mxu0 0.0
        %2091 = vmatpush1.msra.mxu0 %v2053
        %2092 = vmatprep.subr.mxu0 0.0
        %2093 = vmatpush1.msra.mxu0 %v2054
        %2094 = vmatprep.subr.mxu0 0.0
        %2095 = vmatpush1.msra.mxu0 %v2055
        %2096 = vmatprep.subr.mxu0 0.0
        %2097 = vmatpush1.msra.mxu0 %v2056
        %2098 = vmatprep.subr.mxu0 0.0
        %2099 = vmatpush1.msra.mxu0 %v2072
        %2100 = vmatprep.subr.mxu0 0.0
        %2101 = vmatpush1.msra.mxu0 0.0
        %2102 = vmatprep.subr.mxu0 0.0
        %2103 = vmatpush1.msra.mxu0 0.0
        %2104 = vmatprep.subr.mxu0 0.0
        %2105 = vmatpush1.msra.mxu0 0.0
        %2106 = vmatprep.subr.mxu0 0.0
        %2107 = vmatpush1.msra.mxu0 0.0
        %2108 = vmatprep.subr.mxu0 0.0
        %2109 = vmatpush1.msra.mxu0 0.0
        %2110 = vmatprep.subr.mxu0 0.0
        %2111 = vmatpush1.msra.mxu0 0.0
        %2112 = vmatprep.subr.mxu0 0.0
        %2113 = vmatpush1.msra.mxu0 0.0
        %2114 = vmatprep.subr.mxu0 0.0
        %2115 = vmatpush1.msra.mxu0 0.0
        %2116 = vmatprep.subr.mxu0 0.0
        %2117 = vmatpush1.msra.mxu0 0.0
        %2118 = vmatprep.subr.mxu0 0.0
        %2119 = vmatpush1.msra.mxu0 0.0
        %2120 = vmatprep.subr.mxu0 0.0
        %2121 = vmatpush1.msra.mxu0 0.0
        %2122 = vmatprep.subr.mxu0 0.0
        %2123 = vmatpush1.msra.mxu0 0.0
        %2124 = vmatprep.subr.mxu0 0.0
        %2125 = vmatpush1.msra.mxu0 0.0
        %2126 = vmatprep.subr.mxu0 0.0
        %2127 = vmatpush1.msra.mxu0 0.0
        %2128 = vmatprep.subr.mxu0 0.0
        %2129 = vmatpush1.msra.mxu0 0.0
        %2130 = vmatprep.subr.mxu0 0.0
        %2131 = vmatpush1.msra.mxu0 0.0
        %2132 = vmatprep.subr.mxu0 0.0
        %2133 = vmatpush1.msra.mxu0 0.0
        %2134 = vmatprep.subr.mxu0 0.0
        %2135 = vmatpush1.msra.mxu0 0.0
        %2136 = vmatprep.subr.mxu0 0.0
        %2137 = vmatpush1.msra.mxu0 0.0
        %2138 = vmatprep.mubr.f32.mxu0 0.0
        %2139 = vmatmul.mubr.f32.gmra.mrb[0].mxu0 %v2060
        %v2140 = vpop.f32.mrb[0].mxu0
        %v2141 = vadd.f32 0.0, %v2140
        %v2142 = vpop.f32.mrb[0].mxu0
        %2143 = vmatprep.mubr.f32.mxu0 0.0
        %2144 = vmatmul.mubr.f32.gmra.mrb[0].mxu0 %v2063
        %v2145 = vpop.f32.mrb[0].mxu0
        %v2146 = vadd.f32 0.0, %v2145
        %v2147 = vpop.f32.mrb[0].mxu0
        %2148 = vmatprep.mubr.f32.mxu0 0.0
        %2149 = vmatmul.mubr.f32.gmra.mrb[0].mxu0 %v2066
        %v2150 = vpop.f32.mrb[0].mxu0
        %v2151 = vadd.f32 0.0, %v2150
        %v2152 = vpop.f32.mrb[0].mxu0
        %2153 = vmatprep.mubr.f32.mxu0 0.0
        %2154 = vmatmul.mubr.f32.gmra.mrb[0].mxu0 %v2069
        %v2155 = vpop.f32.mrb[0].mxu0
        %v2156 = vadd.f32 0.0, %v2155
        %v2157 = vpop.f32.mrb[0].mxu0
        %2158 = vdwg.mxu0
        %v2160 = vsel %vm1715, %v1355, 0
        %v2163 = vsel %vm1715, %v1360, 0
        %v2166 = vsel %vm1715, %v1365, 0
        %v2169 = vsel %vm1715, %v1370, 0
        %v2172 = vsel %vm1722, %v1413, 0
        %2174 = vmatprep.subr.mxu0 0.0
        %2175 = vmatpush1.msra.mxu0 %v1373
        %2176 = vmatprep.subr.mxu0 0.0
        %2177 = vmatpush1.msra.mxu0 %v1374
        %2178 = vmatprep.subr.mxu0 0.0
        %2179 = vmatpush1.msra.mxu0 %v1375
        %2180 = vmatprep.subr.mxu0 0.0
        %2181 = vmatpush1.msra.mxu0 %v1376
        %2182 = vmatprep.subr.mxu0 0.0
        %2183 = vmatpush1.msra.mxu0 %v1377
        %2184 = vmatprep.subr.mxu0 0.0
        %2185 = vmatpush1.msra.mxu0 %v1378
        %2186 = vmatprep.subr.mxu0 0.0
        %2187 = vmatpush1.msra.mxu0 %v1379
        %2188 = vmatprep.subr.mxu0 0.0
        %2189 = vmatpush1.msra.mxu0 %v1380
        %2190 = vmatprep.subr.mxu0 0.0
        %2191 = vmatpush1.msra.mxu0 %v1381
        %2192 = vmatprep.subr.mxu0 0.0
        %2193 = vmatpush1.msra.mxu0 %v1382
        %2194 = vmatprep.subr.mxu0 0.0
        %2195 = vmatpush1.msra.mxu0 %v1383
        %2196 = vmatprep.subr.mxu0 0.0
        %2197 = vmatpush1.msra.mxu0 %v1384
        %2198 = vmatprep.subr.mxu0 0.0
        %2199 = vmatpush1.msra.mxu0 %v1385
        %2200 = vmatprep.subr.mxu0 0.0
        %2201 = vmatpush1.msra.mxu0 %v1386
        %2202 = vmatprep.subr.mxu0 0.0
        %2203 = vmatpush1.msra.mxu0 %v1387
        %2204 = vmatprep.subr.mxu0 0.0
        %2205 = vmatpush1.msra.mxu0 %v1388
        %2206 = vmatprep.subr.mxu0 0.0
        %2207 = vmatpush1.msra.mxu0 %v1389
        %2208 = vmatprep.subr.mxu0 0.0
        %2209 = vmatpush1.msra.mxu0 %v1390
        %2210 = vmatprep.subr.mxu0 0.0
        %2211 = vmatpush1.msra.mxu0 %v1391
        %2212 = vmatprep.subr.mxu0 0.0
        %2213 = vmatpush1.msra.mxu0 %v1392
        %2214 = vmatprep.subr.mxu0 0.0
        %2215 = vmatpush1.msra.mxu0 %v1393
        %2216 = vmatprep.subr.mxu0 0.0
        %2217 = vmatpush1.msra.mxu0 %v1394
        %2218 = vmatprep.subr.mxu0 0.0
        %2219 = vmatpush1.msra.mxu0 %v1395
        %2220 = vmatprep.subr.mxu0 0.0
        %2221 = vmatpush1.msra.mxu0 %v1396
        %2222 = vmatprep.subr.mxu0 0.0
        %2223 = vmatpush1.msra.mxu0 %v1397
        %2224 = vmatprep.subr.mxu0 0.0
        %2225 = vmatpush1.msra.mxu0 %v1398
        %2226 = vmatprep.subr.mxu0 0.0
        %2227 = vmatpush1.msra.mxu0 %v1399
        %2228 = vmatprep.subr.mxu0 0.0
        %2229 = vmatpush1.msra.mxu0 %v1400
        %2230 = vmatprep.subr.mxu0 0.0
        %2231 = vmatpush1.msra.mxu0 %v1401
        %2232 = vmatprep.subr.mxu0 0.0
        %2233 = vmatpush1.msra.mxu0 %v1402
        %2234 = vmatprep.subr.mxu0 0.0
        %2235 = vmatpush1.msra.mxu0 %v1403
        %2236 = vmatprep.subr.mxu0 0.0
        %2237 = vmatpush1.msra.mxu0 %v1404
        %2238 = vmatprep.mubr.f32.mxu0 %v1268
        %2239 = vmatmul.mubr.f32.gmra.mrb[0].mxu0 %v1266
        %v2240 = vpop.f32.mrb[0].mxu0
        %v2241 = vadd.f32 %v2141, %v2240
        %v2242 = vpop.f32.mrb[0].mxu0
        %2243 = vmatprep.mubr.f32.mxu0 %v1274
        %2244 = vmatmul.mubr.f32.gmra.mrb[0].mxu0 %v1272
        %v2245 = vpop.f32.mrb[0].mxu0
        %v2246 = vadd.f32 %v2146, %v2245
        %v2247 = vpop.f32.mrb[0].mxu0
        %2248 = vmatprep.mubr.f32.mxu0 %v1280
        %2249 = vmatmul.mubr.f32.gmra.mrb[0].mxu0 %v1278
        %v2250 = vpop.f32.mrb[0].mxu0
        %v2251 = vadd.f32 %v2151, %v2250
        %v2252 = vpop.f32.mrb[0].mxu0
        %2253 = vmatprep.mubr.f32.mxu0 %v1286
        %2254 = vmatmul.mubr.f32.gmra.mrb[0].mxu0 %v1284
        %v2255 = vpop.f32.mrb[0].mxu0
        %v2256 = vadd.f32 %v2156, %v2255
        %v2257 = vpop.f32.mrb[0].mxu0
        %2258 = vdwg.mxu0
        %2259 = vmatprep.subr.mxu0 0.0
        %2260 = vmatpush1.msra.mxu0 %v1405
        %2261 = vmatprep.subr.mxu0 0.0
        %2262 = vmatpush1.msra.mxu0 %v1406
        %2263 = vmatprep.subr.mxu0 0.0
        %2264 = vmatpush1.msra.mxu0 %v1407
        %2265 = vmatprep.subr.mxu0 0.0
        %2266 = vmatpush1.msra.mxu0 %v1408
        %2267 = vmatprep.subr.mxu0 0.0
        %2268 = vmatpush1.msra.mxu0 %v1409
        %2269 = vmatprep.subr.mxu0 0.0
        %2270 = vmatpush1.msra.mxu0 %v1410
        %2271 = vmatprep.subr.mxu0 0.0
        %2272 = vmatpush1.msra.mxu0 %v1411
        %2273 = vmatprep.subr.mxu0 0.0
        %2274 = vmatpush1.msra.mxu0 %v1412
        %2275 = vmatprep.subr.mxu0 0.0
        %2276 = vmatpush1.msra.mxu0 %v2172
        %2277 = vmatprep.subr.mxu0 0.0
        %2278 = vmatpush1.msra.mxu0 0.0
        %2279 = vmatprep.subr.mxu0 0.0
        %2280 = vmatpush1.msra.mxu0 0.0
        %2281 = vmatprep.subr.mxu0 0.0
        %2282 = vmatpush1.msra.mxu0 0.0
        %2283 = vmatprep.subr.mxu0 0.0
        %2284 = vmatpush1.msra.mxu0 0.0
        %2285 = vmatprep.subr.mxu0 0.0
        %2286 = vmatpush1.msra.mxu0 0.0
        %2287 = vmatprep.subr.mxu0 0.0
        %2288 = vmatpush1.msra.mxu0 0.0
        %2289 = vmatprep.subr.mxu0 0.0
        %2290 = vmatpush1.msra.mxu0 0.0
        %2291 = vmatprep.subr.mxu0 0.0
        %2292 = vmatpush1.msra.mxu0 0.0
        %2293 = vmatprep.subr.mxu0 0.0
        %2294 = vmatpush1.msra.mxu0 0.0
        %2295 = vmatprep.subr.mxu0 0.0
        %2296 = vmatpush1.msra.mxu0 0.0
        %2297 = vmatprep.subr.mxu0 0.0
        %2298 = vmatpush1.msra.mxu0 0.0
        %2299 = vmatprep.subr.mxu0 0.0
        %2300 = vmatpush1.msra.mxu0 0.0
        %2301 = vmatprep.subr.mxu0 0.0
        %2302 = vmatpush1.msra.mxu0 0.0
        %2303 = vmatprep.subr.mxu0 0.0
        %2304 = vmatpush1.msra.mxu0 0.0
        %2305 = vmatprep.subr.mxu0 0.0
        %2306 = vmatpush1.msra.mxu0 0.0
        %2307 = vmatprep.subr.mxu0 0.0
        %2308 = vmatpush1.msra.mxu0 0.0
        %2309 = vmatprep.subr.mxu0 0.0
        %2310 = vmatpush1.msra.mxu0 0.0
        %2311 = vmatprep.subr.mxu0 0.0
        %2312 = vmatpush1.msra.mxu0 0.0
        %2313 = vmatprep.subr.mxu0 0.0
        %2314 = vmatpush1.msra.mxu0 0.0
        %2315 = vmatprep.subr.mxu0 0.0
        %2316 = vmatpush1.msra.mxu0 0.0
        %2317 = vmatprep.subr.mxu0 0.0
        %2318 = vmatpush1.msra.mxu0 0.0
        %2319 = vmatprep.subr.mxu0 0.0
        %2320 = vmatpush1.msra.mxu0 0.0
        %2321 = vmatprep.subr.mxu0 0.0
        %2322 = vmatpush1.msra.mxu0 0.0
        %2323 = vmatprep.mubr.f32.mxu0 0.0
        %2324 = vmatmul.mubr.f32.gmra.mrb[0].mxu0 %v2160
        %v2325 = vpop.f32.mrb[0].mxu0
        %v2326 = vadd.f32 %v2241, %v2325
        %v2327 = vpop.f32.mrb[0].mxu0
        %2328 = vmatprep.mubr.f32.mxu0 0.0
        %2329 = vmatmul.mubr.f32.gmra.mrb[0].mxu0 %v2163
        %v2330 = vpop.f32.mrb[0].mxu0
        %v2331 = vadd.f32 %v2246, %v2330
        %v2332 = vpop.f32.mrb[0].mxu0
        %2333 = vmatprep.mubr.f32.mxu0 0.0
        %2334 = vmatmul.mubr.f32.gmra.mrb[0].mxu0 %v2166
        %v2335 = vpop.f32.mrb[0].mxu0
        %v2336 = vadd.f32 %v2251, %v2335
        %v2337 = vpop.f32.mrb[0].mxu0
        %2338 = vmatprep.mubr.f32.mxu0 0.0
        %2339 = vmatmul.mubr.f32.gmra.mrb[0].mxu0 %v2169
        %v2340 = vpop.f32.mrb[0].mxu0
        %v2341 = vadd.f32 %v2256, %v2340
        %v2342 = vpop.f32.mrb[0].mxu0
        %2343 = vdwg.mxu0
        %v2344 = vld [vmem:[%s8] sm:$0xff]
        %v2345 = vld [vmem:[%s8 + $0x8] sm:$0xff]
        %v2346 = vld [vmem:[%s8 + $0x10] sm:$0xff]
        %v2347 = vld [vmem:[%s8 + $0x18] sm:$0xff]
        %2349 = vset.pattern.permute.xlu0 0
        %2350 = vperm.xlu0 %2349, %v2344
        %v2351 = vpop.permute.xlu0 %2350
        %2354 = vset.pattern.permute.xlu0 0
        %2355 = vperm.xlu0 %2354, %v2345
        %v2356 = vpop.permute.xlu0 %2355
        %2359 = vset.pattern.permute.xlu0 0
        %2360 = vperm.xlu0 %2359, %v2346
        %v2361 = vpop.permute.xlu0 %2360
        %2364 = vset.pattern.permute.xlu0 0
        %2365 = vperm.xlu0 %2364, %v2347
        %v2366 = vpop.permute.xlu0 %2365
        %v2368 = vadd.f32 %v2326, %v2351
        %v2369 = vadd.f32 %v2331, %v2356
        %v2370 = vadd.f32 %v2336, %v2361
        %v2371 = vadd.f32 %v2341, %v2366
        %vm2372 = vcmask 523264
        %2373 = vst.msk [vmem:[%s433] sm:$0xff] %vm2372, %v2368
        %2374 = vst.msk [vmem:[%s433 + $0x8] sm:$0xff] %vm2372, %v2369
        %2375 = vst.msk [vmem:[%s433 + $0x10] sm:$0xff] %vm2372, %v2370
        %2376 = vst.msk [vmem:[%s433 + $0x18] sm:$0xff] %vm2372, %v2371
        %s2377 = sand.u32 %s313, 1
        %s2378 = scalar_lea.sflag [#allocation3], %s2377
        %s2379 = sand.u32 %s313, 1
        %s2380 = smul.addr %s2379, 32
        %s2381 = scalar_lea.vmem [#allocation2], %s2380
        // Predicated region
        $region73: #{tpu_custom_call.1} parent=71 // pred_check
          %p2382 = pneg %p323
        $region74: #{tpu_custom_call.1} parent=71 // pred_check_branch
          %2384 = sbr.rel (%p2382) target = $region76
        $region75: #{tpu_custom_call.1} parent=71 // pred_region
          %s2386 = ssub.s32 512, 512
          %2387 = vsyncadd %s2378, %s2386
          %s2388 = smul.addr %s27, 4
          %s2389 = smul.addr %s2388, 128
          %s2390 = scalar_lea.hbm %s13, %s2389
          %s2391 = sshll.u32 %s2381, 4
          %s2392 = int_to_ptr.vmem [resolvable:$true] %s2391
          %2397 = dma.vmem_to_hbm [thread:$0]  %s2392, 512, %s2390, %s2378, 128, 128, 8
        $region76: #{tpu_custom_call.1} parent=71 // pred_fallthru
          _
      $region72: #{tpu_custom_call.1} parent=5 // pred_fallthru
        _
      %p2398 = scmp.le.s32.totalorder 2, %s22
      // Predicated region
      $region77: #{tpu_custom_call.1} parent=5 // pred_check
        %p2399 = pneg %p2398
      $region78: #{tpu_custom_call.1} parent=5 // pred_check_branch
        %2401 = sbr.rel (%p2399) target = $region80
      $region79: #{tpu_custom_call.1} parent=5 // pred_region
        %s2402 = ssub.s32 %s22, 2
        // Predicated region
        $region81: #{tpu_custom_call.1} parent=79 // pred_check
          %p2403 = pneg %p329
        $region82: #{tpu_custom_call.1} parent=79 // pred_check_branch
          %2405 = sbr.rel (%p2403) target = $region84
        $region83: #{tpu_custom_call.1} parent=79 // pred_region
          %s2406 = sand.u32 %s314, 1
          %s2407 = scalar_lea.sflag [#allocation3], %s2406
          %s2408 = sand.u32 %s314, 1
          %s2409 = smul.addr %s2408, 32
          %s2410 = scalar_lea.vmem [#allocation2], %s2409
          %2411 = dma.done %s2407, 512
        $region84: #{tpu_custom_call.1} parent=79 // pred_fallthru
          _
      $region80: #{tpu_custom_call.1} parent=5 // pred_fallthru
        _
    $region6: #{tpu_custom_call.1} parent=1 // loop_footer
      %s26 = sadd.s32 1, %s22
    $region7: #{tpu_custom_call.1} parent=1 // loop_footer_branch
      %21 = sbr.rel target = $region3
    $region8: #{tpu_custom_call.1} parent=1 // loop_exit
      _
    %2412 = vsyncpa [#allocation3], 1
    %s2413 = scalar_lea.sflag [#allocation3], 1
    %2414 = vsyncpa %s2413, 1

</llo_original>
